<compile_context>
chip_gen: v7x
topology: tpu7x:2x2x1
jax: 0.10.0
libtpu: 0.0.40
codegen_flags: <defaults>
</compile_context>

<pallas_src>
import functools
import numpy as np
import jax
import jax.numpy as jnp
from jax.experimental import pallas as pl
from jax.experimental.pallas import tpu as pltpu

KERNEL_SIZE = 2          # causal kernel; k=2 keeps residual lengths consistent
N_LAYERS = 3
INPUT_SIZE = 4
HIDDEN_SIZE = 32
OUTPUT_SIZE = 4
RF_SIZE = KERNEL_SIZE ** N_LAYERS

_SLAB_COLS = 2 * HIDDEN_SIZE     # 64 lanes

# ---- head/stem slab (72, 64): weights left-justified, biases in column 32 ---
_HW_CC, _HW_S1, _HW_S2 = 0, 32, 64
_HEAD_ROWS, _BIAS_COL = 72, 32

# ---- per-layer slab (N_LAYERS, 96, 64) --------------------------------------
_LW_DI = 0                       # fused dilated-conv weight  (H, 2H)   rows [0, 32)
_LW_SKO = 32                     # fused skip|out 1x1 weight  (2H, H)   rows [32, 96), cols [0, 32)
_LW_DIB, _LW_DIB_COL = 32, 32    # dilated-conv bias column   (H, 1)
_LW_SKOB, _LW_SKOB_COL = 32, 33  # fused skip|out bias column (2H, 1)
_LAY_ROWS = 96


# ----------------------------------------------------------------------------
# Pallas kernel: full DiCNN forward for a block of whole batch elements
# ----------------------------------------------------------------------------
def _dicnn_kernel(x_ref, lay_ref, head_ref, o_ref, *,
                  n_layers, kernel_size, lz, hidden, cin, cout):
    H = hidden
    f32 = jnp.float32
    cols = x_ref.shape[1]                       # (B_blk * lz) time steps, on lanes

    x_cat = x_ref[...]                          # (2*Cin, cols): [x shifted-by-1 ; x]

    # Stem: causal Conv1d(Cin->H, k=2) — both taps fused into one K=2*Cin matmul.
    cc_w = head_ref[_HW_CC:_HW_CC + H, 0:2 * cin]                 # (H, 2Cin)
    cc_b = head_ref[_HW_CC:_HW_CC + H, _BIAS_COL:_BIAS_COL + 1]   # (H, 1)
    z = jnp.dot(cc_w, x_cat, preferred_element_type=f32) + cc_b   # (H, cols)

    out_acc = jnp.zeros_like(z)
    # The block holds an integer number of whole sequences of length lz, so
    # (col % lz) is the within-sequence time index (gates the per-seq zero fill).
    t_in_seq = jax.lax.broadcasted_iota(jnp.int32, (H, cols), 1) % lz

    for i in range(n_layers):                                      # static unroll
        d = kernel_size ** i
        di_w = lay_ref[i, _LW_DI:_LW_DI + H, 0:2 * H]                              # (H, 2H)
        di_b = lay_ref[i, _LW_DIB:_LW_DIB + H, _LW_DIB_COL:_LW_DIB_COL + 1]        # (H, 1)
        sko_w = lay_ref[i, _LW_SKO:_LW_SKO + 2 * H, 0:H]                           # (2H, H)
        sko_b = lay_ref[i, _LW_SKOB:_LW_SKOB + 2 * H, _LW_SKOB_COL:_LW_SKOB_COL + 1]  # (2H, 1)

        # f.pad(z, (d, 0)) + dilated k=2 conv  ==  tap0 on z shifted right by d
        # time steps (zero-filled per sequence) + tap1 on z itself; both fused.
        z_shift = jnp.where(t_in_seq < d, 0.0, pltpu.roll(z, shift=d, axis=1))
        z_cat = jnp.concatenate([z_shift, z], axis=0)                     # (2H, cols)
        pre = jnp.dot(di_w, z_cat, preferred_element_type=f32) + di_b    # (H, cols)

        # gated = tanh(pre) * sigmoid(pre) with one exp + one approx reciprocal.
        p = jnp.maximum(pre, -20.0)          # exp(-p) stays finite; p->+inf is fine
        e = jnp.exp(-p)
        e2 = e * e
        gated = (1.0 - e2) * pl.reciprocal((1.0 + e2) * (1.0 + e), approx=True)

        # fused skip + residual 1x1 convs -> one (2H, H) matmul, then slice.
        so = jnp.dot(sko_w, gated, preferred_element_type=f32) + sko_b   # (2H, cols)
        out_acc = out_acc + so[0:H, :]            # skip branch
        z = so[H:2 * H, :] + z                    # residual branch (+ z)

    out = jnp.maximum(out_acc, 0.0)                                       # relu
    s1_w = head_ref[_HW_S1:_HW_S1 + H, 0:H]
    s1_b = head_ref[_HW_S1:_HW_S1 + H, _BIAS_COL:_BIAS_COL + 1]
    out = jnp.maximum(
        jnp.dot(s1_w, out, preferred_element_type=f32) + s1_b, 0.0)       # 1x1 + relu
    s2_w = head_ref[_HW_S2:_HW_S2 + cout, 0:H]
    s2_b = head_ref[_HW_S2:_HW_S2 + cout, _BIAS_COL:_BIAS_COL + 1]
    # Lane-dense (Cout, cols) store — unmasked vst whenever cols >= 128.
    o_ref[...] = jnp.dot(s2_w, out, preferred_element_type=f32) + s2_b    # (Cout, cols)


# ----------------------------------------------------------------------------
# Wrapper: weight packing into 2 slabs, input tap concatenation, pallas_call
# ----------------------------------------------------------------------------
def _build_slabs(params):
    H, Cin, Cout, NL = HIDDEN_SIZE, INPUT_SIZE, OUTPUT_SIZE, N_LAYERS

    # torch Conv1d weights are (Cout, Cin, K); in channel-major they are used
    # directly as matmul LHS (no transposes), taps concatenated along K.
    head = jnp.zeros((_HEAD_ROWS, _SLAB_COLS), jnp.float32)
    cc_wcat = jnp.concatenate(
        [params['cc_w'][:, :, 0], params['cc_w'][:, :, 1]], axis=1)     # (H, 2Cin)
    head = head.at[_HW_CC:_HW_CC + H, 0:2 * Cin].set(cc_wcat)
    head = head.at[_HW_CC:_HW_CC + H, _BIAS_COL].set(params['cc_b'])
    head = head.at[_HW_S1:_HW_S1 + H, 0:H].set(params['s1_w'][:, :, 0])
    head = head.at[_HW_S1:_HW_S1 + H, _BIAS_COL].set(params['s1_b'])
    head = head.at[_HW_S2:_HW_S2 + Cout, 0:H].set(params['s2_w'][:, :, 0])
    head = head.at[_HW_S2:_HW_S2 + Cout, _BIAS_COL].set(params['s2_b'])

    lay = jnp.zeros((NL, _LAY_ROWS, _SLAB_COLS), jnp.float32)
    for i in range(NL):
        di_wcat = jnp.concatenate(
            [params['di_w'][i][:, :, 0], params['di_w'][i][:, :, 1]], axis=1)   # (H, 2H)
        sko_wcat = jnp.concatenate(
            [params['sk_w'][i][:, :, 0], params['ot_w'][i][:, :, 0]], axis=0)   # (2H, H)
        sko_bcat = jnp.concatenate([params['sk_b'][i], params['ot_b'][i]], axis=0)  # (2H,)
        lay = lay.at[i, _LW_DI:_LW_DI + H, 0:2 * H].set(di_wcat)
        lay = lay.at[i, _LW_SKO:_LW_SKO + 2 * H, 0:H].set(sko_wcat)
        lay = lay.at[i, _LW_DIB:_LW_DIB + H, _LW_DIB_COL].set(params['di_b'][i])
        lay = lay.at[i, _LW_SKOB:_LW_SKOB + 2 * H, _LW_SKOB_COL].set(sko_bcat)
    return head, lay


def dilated_cnn_forward(x, params, *, num_blocks=None):
    assert KERNEL_SIZE == 2  # kernel written for the length-preserving k=2 case
    B, T, Cin = x.shape
    assert Cin == INPUT_SIZE
    H, Cout = HIDDEN_SIZE, OUTPUT_SIZE

    pad = max(RF_SIZE - T, 0)
    Lz = T + pad

    # Channel-major taps: (2*Cin, B*Lz) with time on the lane axis.
    x_cm = jnp.transpose(x, (0, 2, 1))                              # (B, Cin, T)
    x_cm = jnp.pad(x_cm, ((0, 0), (0, 0), (pad, 0)))                # (B, Cin, Lz)
    x_sh = jnp.pad(x_cm, ((0, 0), (0, 0), (1, 0)))[:, :, :Lz]       # shift-by-1, zero fill
    x_cat = jnp.concatenate([x_sh, x_cm], axis=1)                   # (B, 2Cin, Lz)
    x_cat = jnp.transpose(x_cat, (1, 0, 2)).reshape(2 * Cin, B * Lz)

    head_w, lay_w = _build_slabs(params)

    # Two 'parallel' lane blocks so a 2-TensorCore chip (v7x) can split the
    # work; fall back to one full-array block unless blocks stay lane-aligned.
    if num_blocks is None:
        num_blocks = 2 if (B % 2 == 0 and B >= 2) else 1
    if num_blocks > 1 and (B % num_blocks != 0
                           or ((B // num_blocks) * Lz) % 128 != 0):
        num_blocks = 1
    cols_per_block = (B // num_blocks) * Lz

    kernel = functools.partial(
        _dicnn_kernel, n_layers=N_LAYERS, kernel_size=KERNEL_SIZE,
        lz=Lz, hidden=H, cin=Cin, cout=Cout)

    out_flat = pl.pallas_call(
        kernel,
        out_shape=jax.ShapeDtypeStruct((Cout, B * Lz), jnp.float32),
        grid=(num_blocks,),
        in_specs=[
            pl.BlockSpec((2 * Cin, cols_per_block), lambda g: (0, g)),   # x taps
            pl.BlockSpec(lay_w.shape, lambda g: (0, 0, 0)),              # layer slab
            pl.BlockSpec(head_w.shape, lambda g: (0, 0)),                # stem/head slab
        ],
        out_specs=pl.BlockSpec((Cout, cols_per_block), lambda g: (0, g)),
        compiler_params=pltpu.CompilerParams(dimension_semantics=("parallel",)),
    )(x_cat, lay_w, head_w)

    return jnp.transpose(out_flat.reshape(Cout, B, Lz), (1, 2, 0))       # (B, Lz, Cout)


# ----------------------------------------------------------------------------
# Deterministic parameter initialization (xavier-normal weights, normal biases)
# ----------------------------------------------------------------------------
def init_params(key):
    keys = iter(jax.random.split(key, 32))

    def conv_w(k, cout, cin, ksz):
        std = np.sqrt(2.0 / (cin * ksz + cout * ksz)).astype(np.float32)
        return std * jax.random.normal(k, (cout, cin, ksz), jnp.float32)

    def bias(k, n):
        return jax.random.normal(k, (n,), jnp.float32)

    P = {'cc_w': conv_w(next(keys), HIDDEN_SIZE, INPUT_SIZE, KERNEL_SIZE),
         'cc_b': bias(next(keys), HIDDEN_SIZE),
         'di_w': [], 'di_b': [], 'sk_w': [], 'sk_b': [], 'ot_w': [], 'ot_b': []}
    for _ in range(N_LAYERS):
        P['di_w'].append(conv_w(next(keys), HIDDEN_SIZE, HIDDEN_SIZE, KERNEL_SIZE))
        P['di_b'].append(bias(next(keys), HIDDEN_SIZE))
        P['sk_w'].append(conv_w(next(keys), HIDDEN_SIZE, HIDDEN_SIZE, 1))
        P['sk_b'].append(bias(next(keys), HIDDEN_SIZE))
        P['ot_w'].append(conv_w(next(keys), HIDDEN_SIZE, HIDDEN_SIZE, 1))
        P['ot_b'].append(bias(next(keys), HIDDEN_SIZE))
    P['s1_w'] = conv_w(next(keys), HIDDEN_SIZE, HIDDEN_SIZE, 1)
    P['s1_b'] = bias(next(keys), HIDDEN_SIZE)
    P['s2_w'] = conv_w(next(keys), OUTPUT_SIZE, HIDDEN_SIZE, 1)
    P['s2_b'] = bias(next(keys), OUTPUT_SIZE)
    return P


# ----------------------------------------------------------------------------
# Pure-JAX reference mirroring the PyTorch forward (NCW convs), for validation
# ----------------------------------------------------------------------------
def _conv1d(x, w, b, dilation=1):
    out = jax.lax.conv_general_dilated(
        x, w, window_strides=(1,), padding='VALID', rhs_dilation=(dilation,),
        dimension_numbers=('NCH', 'OIH', 'NCH'))
    return out + b[None, :, None]


def ref_forward(x, P):
    xc = jnp.transpose(x, (0, 2, 1))                       # (B, Cin, T)
    pad = RF_SIZE - xc.shape[2]
    if pad > 0:
        xc = jnp.pad(xc, ((0, 0), (0, 0), (pad, 0)))
    xc = jnp.pad(xc, ((0, 0), (0, 0), (1, 0)))
    z = _conv1d(xc, P['cc_w'], P['cc_b'])
    out = jnp.zeros_like(z)
    for i in range(N_LAYERS):
        d = KERNEL_SIZE ** i
        xp = jnp.pad(z, ((0, 0), (0, 0), (d, 0)))
        pre = _conv1d(xp, P['di_w'][i], P['di_b'][i], dilation=d)
        g = jnp.tanh(pre) * jax.nn.sigmoid(pre)
        s = _conv1d(g, P['sk_w'][i], P['sk_b'][i])
        z = _conv1d(g, P['ot_w'][i], P['ot_b'][i]) + xp[:, :, -pre.shape[2]:]
        out = out + s
    out = jax.nn.relu(out)
    out = jax.nn.relu(_conv1d(out, P['s1_w'], P['s1_b']))
    out = _conv1d(out, P['s2_w'], P['s2_b'])
    return jnp.transpose(out, (0, 2, 1))


# TODO(synk): get_scores / dtw_loss / get_alignment / fc head are not part of the
# forward hot path and are intentionally not implemented as Pallas kernels.

if __name__ == "__main__":
    key = jax.random.PRNGKey(0)
    kp, kx = jax.random.split(key)
    P = init_params(kp)
    x = jax.random.normal(kx, (2, 8, INPUT_SIZE), jnp.float32)   # (batch, seq, input_size)

    out = dilated_cnn_forward(x, P)
    out = jax.block_until_ready(out)

    ref = ref_forward(x, P)
    np.testing.assert_allclose(np.asarray(out), np.asarray(ref), rtol=1e-2, atol=1e-2)
    print("KERNEL_OK")
</pallas_src>

<mosaic_0001>
module attributes {stable_mosaic.version = 11 : i64} {
  func.func @_dicnn_kernel(%arg0: i32, %arg1: memref<8x16xf32, #tpu.memory_space<vmem>>, %arg2: memref<3x96x64xf32, #tpu.memory_space<vmem>>, %arg3: memref<72x64xf32, #tpu.memory_space<vmem>>, %arg4: memref<4x16xf32, #tpu.memory_space<vmem>>) attributes {dimension_semantics = [#tpu.dimension_semantics<parallel>], iteration_bounds = array<i64: 1>, scalar_prefetch = 0 : i64, scratch_operands = 0 : i64, tpu.core_type = #tpu.core_type<tc>, window_params = [{transform_indices = @transform_0, window_bounds = array<i64: 8, 16>}, {pipeline_mode = #tpu.pipeline_mode<synchronous>, transform_indices = @transform_1, window_bounds = array<i64: 3, 96, 64>}, {pipeline_mode = #tpu.pipeline_mode<synchronous>, transform_indices = @transform_2, window_bounds = array<i64: 72, 64>}, {transform_indices = @transform_3, window_bounds = array<i64: 4, 16>}]} {
    %c0 = arith.constant 0 : index
    %c0_0 = arith.constant 0 : index
    %0 = vector.load %arg1[%c0, %c0_0] : memref<8x16xf32, #tpu.memory_space<vmem>>, vector<8x16xf32>
    %c0_1 = arith.constant 0 : index
    %c0_2 = arith.constant 0 : index
    %1 = vector.load %arg3[%c0_1, %c0_2] : memref<72x64xf32, #tpu.memory_space<vmem>>, vector<32x8xf32>
    %c0_3 = arith.constant 0 : index
    %c32 = arith.constant 32 : index
    %2 = vector.load %arg3[%c0_3, %c32] : memref<72x64xf32, #tpu.memory_space<vmem>>, vector<32x1xf32>
    %cst = arith.constant dense<0.000000e+00> : vector<32x16xf32>
    %3 = tpu.matmul %1, %0, %cst {dimension_numbers = #tpu.dot_dimension_numbers<[1], [0], [0], [1], [0, 0, 1, 1], [], []>} : vector<32x8xf32>, vector<8x16xf32>, vector<32x16xf32> -> vector<32x16xf32>
    %4 = vector.broadcast %2 : vector<32x1xf32> to vector<32x16xf32>
    %5 = arith.addf %3, %4 : vector<32x16xf32>
    %cst_4 = arith.constant 0.000000e+00 : f32
    %6 = vector.broadcast %cst_4 : f32 to vector<32x16xf32>
    %7 = tpu.iota {dimensions = array<i32: 1>} : vector<32x16xi32>
    %c8_i32 = arith.constant 8 : i32
    %c0_i32 = arith.constant 0 : i32
    %8 = arith.cmpi eq, %c8_i32, %c0_i32 : i32
    %c1_i32 = arith.constant 1 : i32
    %9 = arith.select %8, %c1_i32, %c8_i32 : i32
    %10 = vector.broadcast %9 : i32 to vector<32x16xi32>
    %11 = arith.remsi %7, %10 : vector<32x16xi32>
    %c0_i32_5 = arith.constant 0 : i32
    %12 = vector.broadcast %c0_i32_5 : i32 to vector<32x16xi32>
    %13 = arith.cmpi ne, %11, %12 : vector<32x16xi32>
    %c0_i32_6 = arith.constant 0 : i32
    %14 = vector.broadcast %c0_i32_6 : i32 to vector<32x16xi32>
    %15 = arith.cmpi slt, %11, %14 : vector<32x16xi32>
    %c0_i32_7 = arith.constant 0 : i32
    %16 = arith.cmpi slt, %9, %c0_i32_7 : i32
    %17 = vector.broadcast %16 : i1 to vector<32x16xi1>
    %18 = vector.broadcast %17 : vector<32x16xi1> to vector<32x16xi1>
    %19 = arith.xori %15, %18 : vector<32x16xi1>
    %20 = arith.andi %19, %13 : vector<32x16xi1>
    %21 = vector.broadcast %9 : i32 to vector<32x16xi32>
    %22 = arith.addi %11, %21 : vector<32x16xi32>
    %23 = arith.select %20, %22, %11 : vector<32x16xi1>, vector<32x16xi32>
    %c0_8 = arith.constant 0 : index
    %c0_9 = arith.constant 0 : index
    %c0_10 = arith.constant 0 : index
    %24 = vector.load %arg2[%c0_8, %c0_9, %c0_10] : memref<3x96x64xf32, #tpu.memory_space<vmem>>, vector<1x32x64xf32>
    %25 = vector.shape_cast %24 : vector<1x32x64xf32> to vector<32x64xf32>
    %c0_11 = arith.constant 0 : index
    %c32_12 = arith.constant 32 : index
    %c32_13 = arith.constant 32 : index
    %26 = vector.load %arg2[%c0_11, %c32_12, %c32_13] : memref<3x96x64xf32, #tpu.memory_space<vmem>>, vector<1x32x1xf32>
    %27 = vector.shape_cast %26 : vector<1x32x1xf32> to vector<32x1xf32>
    %c0_14 = arith.constant 0 : index
    %c32_15 = arith.constant 32 : index
    %c0_16 = arith.constant 0 : index
    %28 = vector.load %arg2[%c0_14, %c32_15, %c0_16] : memref<3x96x64xf32, #tpu.memory_space<vmem>>, vector<1x64x32xf32>
    %29 = vector.shape_cast %28 : vector<1x64x32xf32> to vector<64x32xf32>
    %c0_17 = arith.constant 0 : index
    %c32_18 = arith.constant 32 : index
    %c33 = arith.constant 33 : index
    %30 = vector.load %arg2[%c0_17, %c32_18, %c33] : memref<3x96x64xf32, #tpu.memory_space<vmem>>, vector<1x64x1xf32>
    %31 = vector.shape_cast %30 : vector<1x64x1xf32> to vector<64x1xf32>
    %c1_i32_19 = arith.constant 1 : i32
    %32 = vector.broadcast %c1_i32_19 : i32 to vector<32x16xi32>
    %33 = arith.cmpi slt, %23, %32 : vector<32x16xi32>
    %c1_i32_20 = arith.constant 1 : i32
    %34 = tpu.dynamic_rotate %5 by %c1_i32_20 dim 1 : vector<32x16xf32>, i32 -> vector<32x16xf32>
    %cst_21 = arith.constant 0.000000e+00 : f32
    %35 = vector.broadcast %cst_21 : f32 to vector<32x16xf32>
    %36 = arith.select %33, %35, %34 : vector<32x16xi1>, vector<32x16xf32>
    %37 = tpu.concatenate %36, %5 in 0 : vector<32x16xf32>, vector<32x16xf32> -> vector<64x16xf32>
    %cst_22 = arith.constant dense<0.000000e+00> : vector<32x16xf32>
    %38 = tpu.matmul %25, %37, %cst_22 {dimension_numbers = #tpu.dot_dimension_numbers<[1], [0], [0], [1], [0, 0, 1, 1], [], []>} : vector<32x64xf32>, vector<64x16xf32>, vector<32x16xf32> -> vector<32x16xf32>
    %39 = vector.broadcast %27 : vector<32x1xf32> to vector<32x16xf32>
    %40 = arith.addf %38, %39 : vector<32x16xf32>
    %cst_23 = arith.constant -2.000000e+01 : f32
    %41 = vector.broadcast %cst_23 : f32 to vector<32x16xf32>
    %42 = arith.maximumf %40, %41 : vector<32x16xf32>
    %cst_24 = arith.constant 0.000000e+00 : f32
    %43 = vector.broadcast %cst_24 : f32 to vector<32x16xf32>
    %44 = arith.subf %43, %42 : vector<32x16xf32>
    %45 = math.exp %44 : vector<32x16xf32>
    %46 = arith.mulf %45, %45 : vector<32x16xf32>
    %cst_25 = arith.constant 1.000000e+00 : f32
    %47 = vector.broadcast %cst_25 : f32 to vector<32x16xf32>
    %48 = arith.subf %47, %46 : vector<32x16xf32>
    %cst_26 = arith.constant 1.000000e+00 : f32
    %49 = vector.broadcast %cst_26 : f32 to vector<32x16xf32>
    %50 = arith.addf %49, %46 : vector<32x16xf32>
    %cst_27 = arith.constant 1.000000e+00 : f32
    %51 = vector.broadcast %cst_27 : f32 to vector<32x16xf32>
    %52 = arith.addf %51, %45 : vector<32x16xf32>
    %53 = arith.mulf %50, %52 : vector<32x16xf32>
    %54 = tpu.reciprocal %53 {approx = true} : vector<32x16xf32> -> vector<32x16xf32>
    %55 = arith.mulf %48, %54 : vector<32x16xf32>
    %cst_28 = arith.constant dense<0.000000e+00> : vector<64x16xf32>
    %56 = tpu.matmul %29, %55, %cst_28 {dimension_numbers = #tpu.dot_dimension_numbers<[1], [0], [0], [1], [0, 0, 1, 1], [], []>} : vector<64x32xf32>, vector<32x16xf32>, vector<64x16xf32> -> vector<64x16xf32>
    %57 = vector.broadcast %31 : vector<64x1xf32> to vector<64x16xf32>
    %58 = arith.addf %56, %57 : vector<64x16xf32>
    %59 = vector.extract_strided_slice %58 {offsets = [0, 0], sizes = [32, 16], strides = [1, 1]} : vector<64x16xf32> to vector<32x16xf32>
    %60 = arith.addf %6, %59 : vector<32x16xf32>
    %61 = vector.extract_strided_slice %58 {offsets = [32, 0], sizes = [32, 16], strides = [1, 1]} : vector<64x16xf32> to vector<32x16xf32>
    %62 = arith.addf %61, %5 : vector<32x16xf32>
    %c1 = arith.constant 1 : index
    %c0_29 = arith.constant 0 : index
    %c0_30 = arith.constant 0 : index
    %63 = vector.load %arg2[%c1, %c0_29, %c0_30] : memref<3x96x64xf32, #tpu.memory_space<vmem>>, vector<1x32x64xf32>
    %64 = vector.shape_cast %63 : vector<1x32x64xf32> to vector<32x64xf32>
    %c1_31 = arith.constant 1 : index
    %c32_32 = arith.constant 32 : index
    %c32_33 = arith.constant 32 : index
    %65 = vector.load %arg2[%c1_31, %c32_32, %c32_33] : memref<3x96x64xf32, #tpu.memory_space<vmem>>, vector<1x32x1xf32>
    %66 = vector.shape_cast %65 : vector<1x32x1xf32> to vector<32x1xf32>
    %c1_34 = arith.constant 1 : index
    %c32_35 = arith.constant 32 : index
    %c0_36 = arith.constant 0 : index
    %67 = vector.load %arg2[%c1_34, %c32_35, %c0_36] : memref<3x96x64xf32, #tpu.memory_space<vmem>>, vector<1x64x32xf32>
    %68 = vector.shape_cast %67 : vector<1x64x32xf32> to vector<64x32xf32>
    %c1_37 = arith.constant 1 : index
    %c32_38 = arith.constant 32 : index
    %c33_39 = arith.constant 33 : index
    %69 = vector.load %arg2[%c1_37, %c32_38, %c33_39] : memref<3x96x64xf32, #tpu.memory_space<vmem>>, vector<1x64x1xf32>
    %70 = vector.shape_cast %69 : vector<1x64x1xf32> to vector<64x1xf32>
    %c2_i32 = arith.constant 2 : i32
    %71 = vector.broadcast %c2_i32 : i32 to vector<32x16xi32>
    %72 = arith.cmpi slt, %23, %71 : vector<32x16xi32>
    %c2_i32_40 = arith.constant 2 : i32
    %73 = tpu.dynamic_rotate %62 by %c2_i32_40 dim 1 : vector<32x16xf32>, i32 -> vector<32x16xf32>
    %cst_41 = arith.constant 0.000000e+00 : f32
    %74 = vector.broadcast %cst_41 : f32 to vector<32x16xf32>
    %75 = arith.select %72, %74, %73 : vector<32x16xi1>, vector<32x16xf32>
    %76 = tpu.concatenate %75, %62 in 0 : vector<32x16xf32>, vector<32x16xf32> -> vector<64x16xf32>
    %cst_42 = arith.constant dense<0.000000e+00> : vector<32x16xf32>
    %77 = tpu.matmul %64, %76, %cst_42 {dimension_numbers = #tpu.dot_dimension_numbers<[1], [0], [0], [1], [0, 0, 1, 1], [], []>} : vector<32x64xf32>, vector<64x16xf32>, vector<32x16xf32> -> vector<32x16xf32>
    %78 = vector.broadcast %66 : vector<32x1xf32> to vector<32x16xf32>
    %79 = arith.addf %77, %78 : vector<32x16xf32>
    %cst_43 = arith.constant -2.000000e+01 : f32
    %80 = vector.broadcast %cst_43 : f32 to vector<32x16xf32>
    %81 = arith.maximumf %79, %80 : vector<32x16xf32>
    %cst_44 = arith.constant 0.000000e+00 : f32
    %82 = vector.broadcast %cst_44 : f32 to vector<32x16xf32>
    %83 = arith.subf %82, %81 : vector<32x16xf32>
    %84 = math.exp %83 : vector<32x16xf32>
    %85 = arith.mulf %84, %84 : vector<32x16xf32>
    %cst_45 = arith.constant 1.000000e+00 : f32
    %86 = vector.broadcast %cst_45 : f32 to vector<32x16xf32>
    %87 = arith.subf %86, %85 : vector<32x16xf32>
    %cst_46 = arith.constant 1.000000e+00 : f32
    %88 = vector.broadcast %cst_46 : f32 to vector<32x16xf32>
    %89 = arith.addf %88, %85 : vector<32x16xf32>
    %cst_47 = arith.constant 1.000000e+00 : f32
    %90 = vector.broadcast %cst_47 : f32 to vector<32x16xf32>
    %91 = arith.addf %90, %84 : vector<32x16xf32>
    %92 = arith.mulf %89, %91 : vector<32x16xf32>
    %93 = tpu.reciprocal %92 {approx = true} : vector<32x16xf32> -> vector<32x16xf32>
    %94 = arith.mulf %87, %93 : vector<32x16xf32>
    %cst_48 = arith.constant dense<0.000000e+00> : vector<64x16xf32>
    %95 = tpu.matmul %68, %94, %cst_48 {dimension_numbers = #tpu.dot_dimension_numbers<[1], [0], [0], [1], [0, 0, 1, 1], [], []>} : vector<64x32xf32>, vector<32x16xf32>, vector<64x16xf32> -> vector<64x16xf32>
    %96 = vector.broadcast %70 : vector<64x1xf32> to vector<64x16xf32>
    %97 = arith.addf %95, %96 : vector<64x16xf32>
    %98 = vector.extract_strided_slice %97 {offsets = [0, 0], sizes = [32, 16], strides = [1, 1]} : vector<64x16xf32> to vector<32x16xf32>
    %99 = arith.addf %60, %98 : vector<32x16xf32>
    %100 = vector.extract_strided_slice %97 {offsets = [32, 0], sizes = [32, 16], strides = [1, 1]} : vector<64x16xf32> to vector<32x16xf32>
    %101 = arith.addf %100, %62 : vector<32x16xf32>
    %c2 = arith.constant 2 : index
    %c0_49 = arith.constant 0 : index
    %c0_50 = arith.constant 0 : index
    %102 = vector.load %arg2[%c2, %c0_49, %c0_50] : memref<3x96x64xf32, #tpu.memory_space<vmem>>, vector<1x32x64xf32>
    %103 = vector.shape_cast %102 : vector<1x32x64xf32> to vector<32x64xf32>
    %c2_51 = arith.constant 2 : index
    %c32_52 = arith.constant 32 : index
    %c32_53 = arith.constant 32 : index
    %104 = vector.load %arg2[%c2_51, %c32_52, %c32_53] : memref<3x96x64xf32, #tpu.memory_space<vmem>>, vector<1x32x1xf32>
    %105 = vector.shape_cast %104 : vector<1x32x1xf32> to vector<32x1xf32>
    %c2_54 = arith.constant 2 : index
    %c32_55 = arith.constant 32 : index
    %c0_56 = arith.constant 0 : index
    %106 = vector.load %arg2[%c2_54, %c32_55, %c0_56] : memref<3x96x64xf32, #tpu.memory_space<vmem>>, vector<1x64x32xf32>
    %107 = vector.shape_cast %106 : vector<1x64x32xf32> to vector<64x32xf32>
    %c2_57 = arith.constant 2 : index
    %c32_58 = arith.constant 32 : index
    %c33_59 = arith.constant 33 : index
    %108 = vector.load %arg2[%c2_57, %c32_58, %c33_59] : memref<3x96x64xf32, #tpu.memory_space<vmem>>, vector<1x64x1xf32>
    %109 = vector.shape_cast %108 : vector<1x64x1xf32> to vector<64x1xf32>
    %c4_i32 = arith.constant 4 : i32
    %110 = vector.broadcast %c4_i32 : i32 to vector<32x16xi32>
    %111 = arith.cmpi slt, %23, %110 : vector<32x16xi32>
    %c4_i32_60 = arith.constant 4 : i32
    %112 = tpu.dynamic_rotate %101 by %c4_i32_60 dim 1 : vector<32x16xf32>, i32 -> vector<32x16xf32>
    %cst_61 = arith.constant 0.000000e+00 : f32
    %113 = vector.broadcast %cst_61 : f32 to vector<32x16xf32>
    %114 = arith.select %111, %113, %112 : vector<32x16xi1>, vector<32x16xf32>
    %115 = tpu.concatenate %114, %101 in 0 : vector<32x16xf32>, vector<32x16xf32> -> vector<64x16xf32>
    %cst_62 = arith.constant dense<0.000000e+00> : vector<32x16xf32>
    %116 = tpu.matmul %103, %115, %cst_62 {dimension_numbers = #tpu.dot_dimension_numbers<[1], [0], [0], [1], [0, 0, 1, 1], [], []>} : vector<32x64xf32>, vector<64x16xf32>, vector<32x16xf32> -> vector<32x16xf32>
    %117 = vector.broadcast %105 : vector<32x1xf32> to vector<32x16xf32>
    %118 = arith.addf %116, %117 : vector<32x16xf32>
    %cst_63 = arith.constant -2.000000e+01 : f32
    %119 = vector.broadcast %cst_63 : f32 to vector<32x16xf32>
    %120 = arith.maximumf %118, %119 : vector<32x16xf32>
    %cst_64 = arith.constant 0.000000e+00 : f32
    %121 = vector.broadcast %cst_64 : f32 to vector<32x16xf32>
    %122 = arith.subf %121, %120 : vector<32x16xf32>
    %123 = math.exp %122 : vector<32x16xf32>
    %124 = arith.mulf %123, %123 : vector<32x16xf32>
    %cst_65 = arith.constant 1.000000e+00 : f32
    %125 = vector.broadcast %cst_65 : f32 to vector<32x16xf32>
    %126 = arith.subf %125, %124 : vector<32x16xf32>
    %cst_66 = arith.constant 1.000000e+00 : f32
    %127 = vector.broadcast %cst_66 : f32 to vector<32x16xf32>
    %128 = arith.addf %127, %124 : vector<32x16xf32>
    %cst_67 = arith.constant 1.000000e+00 : f32
    %129 = vector.broadcast %cst_67 : f32 to vector<32x16xf32>
    %130 = arith.addf %129, %123 : vector<32x16xf32>
    %131 = arith.mulf %128, %130 : vector<32x16xf32>
    %132 = tpu.reciprocal %131 {approx = true} : vector<32x16xf32> -> vector<32x16xf32>
    %133 = arith.mulf %126, %132 : vector<32x16xf32>
    %cst_68 = arith.constant dense<0.000000e+00> : vector<64x16xf32>
    %134 = tpu.matmul %107, %133, %cst_68 {dimension_numbers = #tpu.dot_dimension_numbers<[1], [0], [0], [1], [0, 0, 1, 1], [], []>} : vector<64x32xf32>, vector<32x16xf32>, vector<64x16xf32> -> vector<64x16xf32>
    %135 = vector.broadcast %109 : vector<64x1xf32> to vector<64x16xf32>
    %136 = arith.addf %134, %135 : vector<64x16xf32>
    %137 = vector.extract_strided_slice %136 {offsets = [0, 0], sizes = [32, 16], strides = [1, 1]} : vector<64x16xf32> to vector<32x16xf32>
    %138 = arith.addf %99, %137 : vector<32x16xf32>
    %cst_69 = arith.constant 0.000000e+00 : f32
    %139 = vector.broadcast %cst_69 : f32 to vector<32x16xf32>
    %140 = arith.maximumf %138, %139 : vector<32x16xf32>
    %c32_70 = arith.constant 32 : index
    %c0_71 = arith.constant 0 : index
    %141 = vector.load %arg3[%c32_70, %c0_71] : memref<72x64xf32, #tpu.memory_space<vmem>>, vector<32x32xf32>
    %c32_72 = arith.constant 32 : index
    %c32_73 = arith.constant 32 : index
    %142 = vector.load %arg3[%c32_72, %c32_73] : memref<72x64xf32, #tpu.memory_space<vmem>>, vector<32x1xf32>
    %cst_74 = arith.constant dense<0.000000e+00> : vector<32x16xf32>
    %143 = tpu.matmul %141, %140, %cst_74 {dimension_numbers = #tpu.dot_dimension_numbers<[1], [0], [0], [1], [0, 0, 1, 1], [], []>} : vector<32x32xf32>, vector<32x16xf32>, vector<32x16xf32> -> vector<32x16xf32>
    %144 = vector.broadcast %142 : vector<32x1xf32> to vector<32x16xf32>
    %145 = arith.addf %143, %144 : vector<32x16xf32>
    %cst_75 = arith.constant 0.000000e+00 : f32
    %146 = vector.broadcast %cst_75 : f32 to vector<32x16xf32>
    %147 = arith.maximumf %145, %146 : vector<32x16xf32>
    %c64 = arith.constant 64 : index
    %c0_76 = arith.constant 0 : index
    %148 = vector.load %arg3[%c64, %c0_76] : memref<72x64xf32, #tpu.memory_space<vmem>>, vector<4x32xf32>
    %c64_77 = arith.constant 64 : index
    %c32_78 = arith.constant 32 : index
    %149 = vector.load %arg3[%c64_77, %c32_78] : memref<72x64xf32, #tpu.memory_space<vmem>>, vector<4x1xf32>
    %cst_79 = arith.constant dense<0.000000e+00> : vector<4x16xf32>
    %150 = tpu.matmul %148, %147, %cst_79 {dimension_numbers = #tpu.dot_dimension_numbers<[1], [0], [0], [1], [0, 0, 1, 1], [], []>} : vector<4x32xf32>, vector<32x16xf32>, vector<4x16xf32> -> vector<4x16xf32>
    %151 = vector.broadcast %149 : vector<4x1xf32> to vector<4x16xf32>
    %152 = arith.addf %150, %151 : vector<4x16xf32>
    %c0_80 = arith.constant 0 : index
    %c0_81 = arith.constant 0 : index
    %153 = vector.load %arg4[%c0_80, %c0_81] : memref<4x16xf32, #tpu.memory_space<vmem>>, vector<4x16xf32>
    tpu.vector_store %arg4[%c0_80, %c0_81], %152 {strides = array<i32>} : memref<4x16xf32, #tpu.memory_space<vmem>>, vector<4x16xf32>,
    return
  }
  func.func @transform_0(%arg0: i32) -> (i32, i32) {
    %c0_i32 = arith.constant 0 : i32
    %c0_i32_0 = arith.constant 0 : i32
    return %c0_i32, %arg0 : i32, i32
  }
  func.func @transform_1(%arg0: i32) -> (i32, i32, i32) {
    %c0_i32 = arith.constant 0 : i32
    %c0_i32_0 = arith.constant 0 : i32
    %c0_i32_1 = arith.constant 0 : i32
    %c0_i32_2 = arith.constant 0 : i32
    return %c0_i32, %c0_i32_0, %c0_i32_1 : i32, i32, i32
  }
  func.func @transform_2(%arg0: i32) -> (i32, i32) {
    %c0_i32 = arith.constant 0 : i32
    %c0_i32_0 = arith.constant 0 : i32
    %c0_i32_1 = arith.constant 0 : i32
    return %c0_i32, %c0_i32_0 : i32, i32
  }
  func.func @transform_3(%arg0: i32) -> (i32, i32) {
    %c0_i32 = arith.constant 0 : i32
    %c0_i32_0 = arith.constant 0 : i32
    return %c0_i32, %arg0 : i32, i32
  }
}

</mosaic_0001>

<llo_original>
// kernel: tpu_custom_call.1
$region0: #{tpu_custom_call.1}
  #allocation0 [shape = 'u32[]', space=smem, size = 0x4, offset = 0x4, fixed_abs, tag = 'smem constant byte address 0x4 - core index']
  #allocation1 [shape = 'u32[144,128]{1,0:T(1,128)}', space=vmem, size = 0x12000, scoped, tag = 'internal scratch']
  %s0 = inlined_call_operand.vmem [shape: f32[8,16], index: 0, kind: input, shape index: {}]
  %s1 = inlined_call_operand.vmem [shape: f32[3,96,64], index: 1, kind: input, shape index: {}]
  %s2 = inlined_call_operand.vmem [shape: f32[72,64], index: 2, kind: input, shape index: {}]
  %s3 = inlined_call_operand.hbm [shape: f32[4,16], index: 3, kind: output, shape index: {}]
  %s4 = sld [smem:[#allocation0]]
  $region22: #{tpu_custom_call.1} parent=0
    _
  %s6 = ssub.s32 1, %s4
  %s7 = scalar_select 0, %s6, %s4
  $region1: #{tpu_custom_call.1} parent=0
    #allocation2 [shape = 'u8[2048]{0}', space=vmem, size = 0x800, scoped, tag = 'output window, operand 0, single buffered']
    #allocation3 [shape = 's32[1]{0}', space=sflag, size = 0x4, scoped, tag = 'scoped memory for tpu_custom_call.1']
    %8 = vsyncpa [#allocation3], 0
    // Predicated region
    $region2: #{tpu_custom_call.1} parent=1 // pred_check
      _
    $region3: #{tpu_custom_call.1} parent=1 // pred_check_branch
      %10 = sbr.rel (0) target = $region5
    $region4: #{tpu_custom_call.1} parent=1 // pred_region
      _
    $region5: #{tpu_custom_call.1} parent=1 // pred_fallthru
      _
    // Predicated region
    $region6: #{tpu_custom_call.1} parent=1 // pred_check
      _
    $region7: #{tpu_custom_call.1} parent=1 // pred_check_branch
      %12 = sbr.rel (0) target = $region9
    $region8: #{tpu_custom_call.1} parent=1 // pred_region
      _
    $region9: #{tpu_custom_call.1} parent=1 // pred_fallthru
      _
    // Predicated region
    $region10: #{tpu_custom_call.1} parent=1 // pred_check
      _
    $region11: #{tpu_custom_call.1} parent=1 // pred_check_branch
      %14 = sbr.rel (0) target = $region13
    $region12: #{tpu_custom_call.1} parent=1 // pred_region
      _
    $region13: #{tpu_custom_call.1} parent=1 // pred_fallthru
      _
    %v15 = vld [vmem:[%s0] sm:$0xff]
    %v16 = vld [vmem:[%s2] sm:$0xff]
    %v17 = vld [vmem:[%s2 + $0x8] sm:$0xff]
    %v18 = vld [vmem:[%s2 + $0x10] sm:$0xff]
    %v19 = vld [vmem:[%s2 + $0x18] sm:$0xff]
    %21 = vset.pattern.permute.xlu0 32
    %22 = vperm.xlu0 %21, %v16
    %v23 = vpop.permute.xlu0 %22
    %26 = vset.pattern.permute.xlu0 32
    %27 = vperm.xlu0 %26, %v17
    %v28 = vpop.permute.xlu0 %27
    %31 = vset.pattern.permute.xlu0 32
    %32 = vperm.xlu0 %31, %v18
    %v33 = vpop.permute.xlu0 %32
    %36 = vset.pattern.permute.xlu0 32
    %37 = vperm.xlu0 %36, %v19
    %v38 = vpop.permute.xlu0 %37
    %vm40 = vcmask 64512
    %v41 = vsel %vm40, %v16, 0
    %v43 = vsel %vm40, %v17, 0
    %v45 = vsel %vm40, %v18, 0
    %v47 = vsel %vm40, %v19, 0
    %49 = vmatprep.subr.mxu0 0.0
    %50 = vmatpush1.msra.mxu0 %v15
    %51 = vmatprep.subr.mxu0 0.0
    %52 = vmatpush1.msra.mxu0 0.0
    %53 = vmatprep.subr.mxu0 0.0
    %54 = vmatpush1.msra.mxu0 0.0
    %55 = vmatprep.subr.mxu0 0.0
    %56 = vmatpush1.msra.mxu0 0.0
    %57 = vmatprep.subr.mxu0 0.0
    %58 = vmatpush1.msra.mxu0 0.0
    %59 = vmatprep.subr.mxu0 0.0
    %60 = vmatpush1.msra.mxu0 0.0
    %61 = vmatprep.subr.mxu0 0.0
    %62 = vmatpush1.msra.mxu0 0.0
    %63 = vmatprep.subr.mxu0 0.0
    %64 = vmatpush1.msra.mxu0 0.0
    %65 = vmatprep.subr.mxu0 0.0
    %66 = vmatpush1.msra.mxu0 0.0
    %67 = vmatprep.subr.mxu0 0.0
    %68 = vmatpush1.msra.mxu0 0.0
    %69 = vmatprep.subr.mxu0 0.0
    %70 = vmatpush1.msra.mxu0 0.0
    %71 = vmatprep.subr.mxu0 0.0
    %72 = vmatpush1.msra.mxu0 0.0
    %73 = vmatprep.subr.mxu0 0.0
    %74 = vmatpush1.msra.mxu0 0.0
    %75 = vmatprep.subr.mxu0 0.0
    %76 = vmatpush1.msra.mxu0 0.0
    %77 = vmatprep.subr.mxu0 0.0
    %78 = vmatpush1.msra.mxu0 0.0
    %79 = vmatprep.subr.mxu0 0.0
    %80 = vmatpush1.msra.mxu0 0.0
    %81 = vmatprep.subr.mxu0 0.0
    %82 = vmatpush1.msra.mxu0 0.0
    %83 = vmatprep.subr.mxu0 0.0
    %84 = vmatpush1.msra.mxu0 0.0
    %85 = vmatprep.subr.mxu0 0.0
    %86 = vmatpush1.msra.mxu0 0.0
    %87 = vmatprep.subr.mxu0 0.0
    %88 = vmatpush1.msra.mxu0 0.0
    %89 = vmatprep.subr.mxu0 0.0
    %90 = vmatpush1.msra.mxu0 0.0
    %91 = vmatprep.subr.mxu0 0.0
    %92 = vmatpush1.msra.mxu0 0.0
    %93 = vmatprep.subr.mxu0 0.0
    %94 = vmatpush1.msra.mxu0 0.0
    %95 = vmatprep.subr.mxu0 0.0
    %96 = vmatpush1.msra.mxu0 0.0
    %97 = vmatprep.subr.mxu0 0.0
    %98 = vmatpush1.msra.mxu0 0.0
    %99 = vmatprep.subr.mxu0 0.0
    %100 = vmatpush1.msra.mxu0 0.0
    %101 = vmatprep.subr.mxu0 0.0
    %102 = vmatpush1.msra.mxu0 0.0
    %103 = vmatprep.subr.mxu0 0.0
    %104 = vmatpush1.msra.mxu0 0.0
    %105 = vmatprep.subr.mxu0 0.0
    %106 = vmatpush1.msra.mxu0 0.0
    %107 = vmatprep.subr.mxu0 0.0
    %108 = vmatpush1.msra.mxu0 0.0
    %109 = vmatprep.subr.mxu0 0.0
    %110 = vmatpush1.msra.mxu0 0.0
    %111 = vmatprep.subr.mxu0 0.0
    %112 = vmatpush1.msra.mxu0 0.0
    %113 = vmatprep.mubr.f32.mxu0 0.0
    %114 = vmatmul.mubr.f32.gmra.mrb[0].mxu0 %v41
    %v115 = vpop.f32.mrb[0].mxu0
    %v116 = vadd.f32 %v23, %v115
    %v117 = vpop.f32.mrb[0].mxu0
    %118 = vmatprep.mubr.f32.mxu0 0.0
    %119 = vmatmul.mubr.f32.gmra.mrb[0].mxu0 %v43
    %v120 = vpop.f32.mrb[0].mxu0
    %v121 = vadd.f32 %v28, %v120
    %v122 = vpop.f32.mrb[0].mxu0
    %123 = vmatprep.mubr.f32.mxu0 0.0
    %124 = vmatmul.mubr.f32.gmra.mrb[0].mxu0 %v45
    %v125 = vpop.f32.mrb[0].mxu0
    %v126 = vadd.f32 %v33, %v125
    %v127 = vpop.f32.mrb[0].mxu0
    %128 = vmatprep.mubr.f32.mxu0 0.0
    %129 = vmatmul.mubr.f32.gmra.mrb[0].mxu0 %v47
    %v130 = vpop.f32.mrb[0].mxu0
    %v131 = vadd.f32 %v38, %v130
    %v132 = vpop.f32.mrb[0].mxu0
    %133 = vdwg.mxu0
    %v134 = vlaneseq
    %v135 = vand.u32 %v134, 127
    %vm136 = vcmp.lt.s32.totalorder %v135, 0
    %v137 = vsub.s32 0, %v135
    %v138 = vsel %vm136, %v137, %v135
    %v139 = vshrl.u32 %v138, 3
    %v140 = vand.u32 %v138, 7
    %v141 = vsub.s32 0, %v140
    %v142 = vsel %vm136, %v141, %v140
    %vm143 = vcmp.ne.s32.totalorder %v142, 0
    %vm144 = vcmp.lt.s32.totalorder %v142, 0
    %vm145 = vmand %vm144, %vm143
    %v146 = vadd.s32 %v142, 8
    %v147 = vsel %vm145, %v146, %v142
    %v148 = vld [vmem:[%s1] sm:$0xff]
    %v149 = vld [vmem:[%s1 + $0x8] sm:$0xff]
    %v150 = vld [vmem:[%s1 + $0x10] sm:$0xff]
    %v151 = vld [vmem:[%s1 + $0x18] sm:$0xff]
    %v152 = vld [vmem:[%s1 + $0x20] sm:$0xff]
    %v153 = vld [vmem:[%s1 + $0x28] sm:$0xff]
    %v154 = vld [vmem:[%s1 + $0x30] sm:$0xff]
    %v155 = vld [vmem:[%s1 + $0x38] sm:$0xff]
    %v156 = vld [vmem:[%s1 + $0x40] sm:$0xff]
    %v157 = vld [vmem:[%s1 + $0x48] sm:$0xff]
    %v158 = vld [vmem:[%s1 + $0x50] sm:$0xff]
    %v159 = vld [vmem:[%s1 + $0x58] sm:$0xff]
    %vm160 = vcmp.lt.s32.totalorder %v147, 1
    %vm161 = vcmask 1047680
    %162 = vrot.lane.b32.xlu0 %v116, 16
    %v163 = vpop.permute.xlu0 %162
    %v164 = vsel %vm161, %v163, %v116
    %165 = vrot.lane.b32.xlu0 %v121, 16
    %v166 = vpop.permute.xlu0 %165
    %v167 = vsel %vm161, %v166, %v121
    %168 = vrot.lane.b32.xlu0 %v126, 16
    %v169 = vpop.permute.xlu0 %168
    %v170 = vsel %vm161, %v169, %v126
    %171 = vrot.lane.b32.xlu0 %v131, 16
    %v172 = vpop.permute.xlu0 %171
    %v173 = vsel %vm161, %v172, %v131
    %174 = vrot.lane.b32.xlu0 %v164, 16
    %v175 = vpop.permute.xlu0 %174
    %176 = vrot.lane.b32.xlu0 %v167, 16
    %v177 = vpop.permute.xlu0 %176
    %178 = vrot.lane.b32.xlu0 %v170, 16
    %v179 = vpop.permute.xlu0 %178
    %180 = vrot.lane.b32.xlu0 %v173, 16
    %v181 = vpop.permute.xlu0 %180
    %v182 = vsel %vm161, %v175, %v116
    %v183 = vsel %vm161, %v177, %v121
    %v184 = vsel %vm161, %v179, %v126
    %v185 = vsel %vm161, %v181, %v131
    %190 = vrot.lane.b32.xlu0 %v182, 113
    %v191 = vpop.permute.xlu0 %190
    %192 = vrot.lane.b32.xlu0 %v183, 113
    %v193 = vpop.permute.xlu0 %192
    %194 = vrot.lane.b32.xlu0 %v184, 113
    %v195 = vpop.permute.xlu0 %194
    %196 = vrot.lane.b32.xlu0 %v185, 113
    %v197 = vpop.permute.xlu0 %196
    %v202 = vsel %vm160, 0.0, %v191
    %v203 = vsel %vm160, 0.0, %v193
    %v204 = vsel %vm160, 0.0, %v195
    %v205 = vsel %vm160, 0.0, %v197
    %207 = vset.pattern.permute.xlu0 32
    %208 = vperm.xlu0 %207, %v152
    %v209 = vpop.permute.xlu0 %208
    %212 = vset.pattern.permute.xlu0 32
    %213 = vperm.xlu0 %212, %v153
    %v214 = vpop.permute.xlu0 %213
    %217 = vset.pattern.permute.xlu0 32
    %218 = vperm.xlu0 %217, %v154
    %v219 = vpop.permute.xlu0 %218
    %222 = vset.pattern.permute.xlu0 32
    %223 = vperm.xlu0 %222, %v155
    %v224 = vpop.permute.xlu0 %223
    %vm226 = vcmask 523264
    %v228 = vsel %vm226, %v148, 0
    %v231 = vsel %vm226, %v149, 0
    %v234 = vsel %vm226, %v150, 0
    %v237 = vsel %vm226, %v151, 0
    %239 = vmatprep.subr.mxu0 0.0
    %240 = vmatpush1.msra.mxu0 %v202
    %241 = vmatprep.subr.mxu0 0.0
    %242 = vmatpush1.msra.mxu0 %v203
    %243 = vmatprep.subr.mxu0 0.0
    %244 = vmatpush1.msra.mxu0 %v204
    %245 = vmatprep.subr.mxu0 0.0
    %246 = vmatpush1.msra.mxu0 %v205
    %247 = vmatprep.subr.mxu0 0.0
    %248 = vmatpush1.msra.mxu0 %v116
    %249 = vmatprep.subr.mxu0 0.0
    %250 = vmatpush1.msra.mxu0 %v121
    %251 = vmatprep.subr.mxu0 0.0
    %252 = vmatpush1.msra.mxu0 %v126
    %253 = vmatprep.subr.mxu0 0.0
    %254 = vmatpush1.msra.mxu0 %v131
    %255 = vmatprep.subr.mxu0 0.0
    %256 = vmatpush1.msra.mxu0 0.0
    %257 = vmatprep.subr.mxu0 0.0
    %258 = vmatpush1.msra.mxu0 0.0
    %259 = vmatprep.subr.mxu0 0.0
    %260 = vmatpush1.msra.mxu0 0.0
    %261 = vmatprep.subr.mxu0 0.0
    %262 = vmatpush1.msra.mxu0 0.0
    %263 = vmatprep.subr.mxu0 0.0
    %264 = vmatpush1.msra.mxu0 0.0
    %265 = vmatprep.subr.mxu0 0.0
    %266 = vmatpush1.msra.mxu0 0.0
    %267 = vmatprep.subr.mxu0 0.0
    %268 = vmatpush1.msra.mxu0 0.0
    %269 = vmatprep.subr.mxu0 0.0
    %270 = vmatpush1.msra.mxu0 0.0
    %271 = vmatprep.subr.mxu0 0.0
    %272 = vmatpush1.msra.mxu0 0.0
    %273 = vmatprep.subr.mxu0 0.0
    %274 = vmatpush1.msra.mxu0 0.0
    %275 = vmatprep.subr.mxu0 0.0
    %276 = vmatpush1.msra.mxu0 0.0
    %277 = vmatprep.subr.mxu0 0.0
    %278 = vmatpush1.msra.mxu0 0.0
    %279 = vmatprep.subr.mxu0 0.0
    %280 = vmatpush1.msra.mxu0 0.0
    %281 = vmatprep.subr.mxu0 0.0
    %282 = vmatpush1.msra.mxu0 0.0
    %283 = vmatprep.subr.mxu0 0.0
    %284 = vmatpush1.msra.mxu0 0.0
    %285 = vmatprep.subr.mxu0 0.0
    %286 = vmatpush1.msra.mxu0 0.0
    %287 = vmatprep.subr.mxu0 0.0
    %288 = vmatpush1.msra.mxu0 0.0
    %289 = vmatprep.subr.mxu0 0.0
    %290 = vmatpush1.msra.mxu0 0.0
    %291 = vmatprep.subr.mxu0 0.0
    %292 = vmatpush1.msra.mxu0 0.0
    %293 = vmatprep.subr.mxu0 0.0
    %294 = vmatpush1.msra.mxu0 0.0
    %295 = vmatprep.subr.mxu0 0.0
    %296 = vmatpush1.msra.mxu0 0.0
    %297 = vmatprep.subr.mxu0 0.0
    %298 = vmatpush1.msra.mxu0 0.0
    %299 = vmatprep.subr.mxu0 0.0
    %300 = vmatpush1.msra.mxu0 0.0
    %301 = vmatprep.subr.mxu0 0.0
    %302 = vmatpush1.msra.mxu0 0.0
    %303 = vmatprep.mubr.f32.mxu0 0.0
    %304 = vmatmul.mubr.f32.gmra.mrb[0].mxu0 %v228
    %v305 = vpop.f32.mrb[0].mxu0
    %v306 = vadd.f32 %v209, %v305
    %v307 = vpop.f32.mrb[0].mxu0
    %308 = vmatprep.mubr.f32.mxu0 0.0
    %309 = vmatmul.mubr.f32.gmra.mrb[0].mxu0 %v231
    %v310 = vpop.f32.mrb[0].mxu0
    %v311 = vadd.f32 %v214, %v310
    %v312 = vpop.f32.mrb[0].mxu0
    %313 = vmatprep.mubr.f32.mxu0 0.0
    %314 = vmatmul.mubr.f32.gmra.mrb[0].mxu0 %v234
    %v315 = vpop.f32.mrb[0].mxu0
    %v316 = vadd.f32 %v219, %v315
    %v317 = vpop.f32.mrb[0].mxu0
    %318 = vmatprep.mubr.f32.mxu0 0.0
    %319 = vmatmul.mubr.f32.gmra.mrb[0].mxu0 %v237
    %v320 = vpop.f32.mrb[0].mxu0
    %v321 = vadd.f32 %v224, %v320
    %v322 = vpop.f32.mrb[0].mxu0
    %323 = vdwg.mxu0
    %v324 = vmax.f32 %v306, -20.0
    %v325 = vmax.f32 %v311, -20.0
    %v326 = vmax.f32 %v316, -20.0
    %v327 = vmax.f32 %v321, -20.0
    %v328 = vsub.f32 0.0, %v324
    %v329 = vsub.f32 0.0, %v325
    %v330 = vsub.f32 0.0, %v326
    %v331 = vsub.f32 0.0, %v327
    %v332 = vmul.f32 %v328, 1.442695
    %v333 = vpow.pop %v332
    %v334 = vmul.f32 %v329, 1.442695
    %v335 = vpow.pop %v334
    %v336 = vmul.f32 %v330, 1.442695
    %v337 = vpow.pop %v336
    %v338 = vmul.f32 %v331, 1.442695
    %v339 = vpow.pop %v338
    %v340 = vmul.f32 %v333, %v333
    %v341 = vmul.f32 %v335, %v335
    %v342 = vmul.f32 %v337, %v337
    %v343 = vmul.f32 %v339, %v339
    %v344 = vsub.f32 1.0, %v340
    %v345 = vsub.f32 1.0, %v341
    %v346 = vsub.f32 1.0, %v342
    %v347 = vsub.f32 1.0, %v343
    %v348 = vadd.f32 %v340, 1.0
    %v349 = vadd.f32 %v341, 1.0
    %v350 = vadd.f32 %v342, 1.0
    %v351 = vadd.f32 %v343, 1.0
    %v352 = vadd.f32 %v333, 1.0
    %v353 = vadd.f32 %v335, 1.0
    %v354 = vadd.f32 %v337, 1.0
    %v355 = vadd.f32 %v339, 1.0
    %v356 = vmul.f32 %v348, %v352
    %v357 = vmul.f32 %v349, %v353
    %v358 = vmul.f32 %v350, %v354
    %v359 = vmul.f32 %v351, %v355
    %v360 = vrcp.pop %v356
    %v361 = vrcp.pop %v357
    %v362 = vrcp.pop %v358
    %v363 = vrcp.pop %v359
    %v364 = vmul.f32 %v344, %v360
    %v365 = vmul.f32 %v345, %v361
    %v366 = vmul.f32 %v346, %v362
    %v367 = vmul.f32 %v347, %v363
    %368 = vset.pattern.permute.xlu0 33
    %369 = vperm.xlu0 %368, %v152
    %v370 = vpop.permute.xlu0 %369
    %372 = vset.pattern.permute.xlu0 33
    %373 = vperm.xlu0 %372, %v153
    %v374 = vpop.permute.xlu0 %373
    %376 = vset.pattern.permute.xlu0 33
    %377 = vperm.xlu0 %376, %v154
    %v378 = vpop.permute.xlu0 %377
    %380 = vset.pattern.permute.xlu0 33
    %381 = vperm.xlu0 %380, %v155
    %v382 = vpop.permute.xlu0 %381
    %385 = vset.pattern.permute.xlu0 33
    %386 = vperm.xlu0 %385, %v156
    %v387 = vpop.permute.xlu0 %386
    %390 = vset.pattern.permute.xlu0 33
    %391 = vperm.xlu0 %390, %v157
    %v392 = vpop.permute.xlu0 %391
    %395 = vset.pattern.permute.xlu0 33
    %396 = vperm.xlu0 %395, %v158
    %v397 = vpop.permute.xlu0 %396
    %400 = vset.pattern.permute.xlu0 33
    %401 = vperm.xlu0 %400, %v159
    %v402 = vpop.permute.xlu0 %401
    %vm404 = vcmask 261120
    %v405 = vsel %vm404, %v152, 0
    %v407 = vsel %vm404, %v153, 0
    %v409 = vsel %vm404, %v154, 0
    %v411 = vsel %vm404, %v155, 0
    %v413 = vsel %vm404, %v156, 0
    %v415 = vsel %vm404, %v157, 0
    %v417 = vsel %vm404, %v158, 0
    %v419 = vsel %vm404, %v159, 0
    %421 = vmatprep.subr.mxu0 0.0
    %422 = vmatpush1.msra.mxu0 %v364
    %423 = vmatprep.subr.mxu0 0.0
    %424 = vmatpush1.msra.mxu0 %v365
    %425 = vmatprep.subr.mxu0 0.0
    %426 = vmatpush1.msra.mxu0 %v366
    %427 = vmatprep.subr.mxu0 0.0
    %428 = vmatpush1.msra.mxu0 %v367
    %429 = vmatprep.subr.mxu0 0.0
    %430 = vmatpush1.msra.mxu0 0.0
    %431 = vmatprep.subr.mxu0 0.0
    %432 = vmatpush1.msra.mxu0 0.0
    %433 = vmatprep.subr.mxu0 0.0
    %434 = vmatpush1.msra.mxu0 0.0
    %435 = vmatprep.subr.mxu0 0.0
    %436 = vmatpush1.msra.mxu0 0.0
    %437 = vmatprep.subr.mxu0 0.0
    %438 = vmatpush1.msra.mxu0 0.0
    %439 = vmatprep.subr.mxu0 0.0
    %440 = vmatpush1.msra.mxu0 0.0
    %441 = vmatprep.subr.mxu0 0.0
    %442 = vmatpush1.msra.mxu0 0.0
    %443 = vmatprep.subr.mxu0 0.0
    %444 = vmatpush1.msra.mxu0 0.0
    %445 = vmatprep.subr.mxu0 0.0
    %446 = vmatpush1.msra.mxu0 0.0
    %447 = vmatprep.subr.mxu0 0.0
    %448 = vmatpush1.msra.mxu0 0.0
    %449 = vmatprep.subr.mxu0 0.0
    %450 = vmatpush1.msra.mxu0 0.0
    %451 = vmatprep.subr.mxu0 0.0
    %452 = vmatpush1.msra.mxu0 0.0
    %453 = vmatprep.subr.mxu0 0.0
    %454 = vmatpush1.msra.mxu0 0.0
    %455 = vmatprep.subr.mxu0 0.0
    %456 = vmatpush1.msra.mxu0 0.0
    %457 = vmatprep.subr.mxu0 0.0
    %458 = vmatpush1.msra.mxu0 0.0
    %459 = vmatprep.subr.mxu0 0.0
    %460 = vmatpush1.msra.mxu0 0.0
    %461 = vmatprep.subr.mxu0 0.0
    %462 = vmatpush1.msra.mxu0 0.0
    %463 = vmatprep.subr.mxu0 0.0
    %464 = vmatpush1.msra.mxu0 0.0
    %465 = vmatprep.subr.mxu0 0.0
    %466 = vmatpush1.msra.mxu0 0.0
    %467 = vmatprep.subr.mxu0 0.0
    %468 = vmatpush1.msra.mxu0 0.0
    %469 = vmatprep.subr.mxu0 0.0
    %470 = vmatpush1.msra.mxu0 0.0
    %471 = vmatprep.subr.mxu0 0.0
    %472 = vmatpush1.msra.mxu0 0.0
    %473 = vmatprep.subr.mxu0 0.0
    %474 = vmatpush1.msra.mxu0 0.0
    %475 = vmatprep.subr.mxu0 0.0
    %476 = vmatpush1.msra.mxu0 0.0
    %477 = vmatprep.subr.mxu0 0.0
    %478 = vmatpush1.msra.mxu0 0.0
    %479 = vmatprep.subr.mxu0 0.0
    %480 = vmatpush1.msra.mxu0 0.0
    %481 = vmatprep.subr.mxu0 0.0
    %482 = vmatpush1.msra.mxu0 0.0
    %483 = vmatprep.subr.mxu0 0.0
    %484 = vmatpush1.msra.mxu0 0.0
    %485 = vmatprep.mubr.f32.mxu0 0.0
    %486 = vmatmul.mubr.f32.gmra.mrb[0].mxu0 %v405
    %v487 = vpop.f32.mrb[0].mxu0
    %v488 = vadd.f32 %v370, %v487
    %v489 = vpop.f32.mrb[0].mxu0
    %490 = vmatprep.mubr.f32.mxu0 0.0
    %491 = vmatmul.mubr.f32.gmra.mrb[0].mxu0 %v407
    %v492 = vpop.f32.mrb[0].mxu0
    %v493 = vadd.f32 %v374, %v492
    %v494 = vpop.f32.mrb[0].mxu0
    %495 = vmatprep.mubr.f32.mxu0 0.0
    %496 = vmatmul.mubr.f32.gmra.mrb[0].mxu0 %v409
    %v497 = vpop.f32.mrb[0].mxu0
    %v498 = vadd.f32 %v378, %v497
    %v499 = vpop.f32.mrb[0].mxu0
    %500 = vmatprep.mubr.f32.mxu0 0.0
    %501 = vmatmul.mubr.f32.gmra.mrb[0].mxu0 %v411
    %v502 = vpop.f32.mrb[0].mxu0
    %v503 = vadd.f32 %v382, %v502
    %v504 = vpop.f32.mrb[0].mxu0
    %505 = vmatprep.mubr.f32.mxu0 0.0
    %506 = vmatmul.mubr.f32.gmra.mrb[0].mxu0 %v413
    %v507 = vpop.f32.mrb[0].mxu0
    %v508 = vadd.f32 %v387, %v507
    %v509 = vpop.f32.mrb[0].mxu0
    %510 = vmatprep.mubr.f32.mxu0 0.0
    %511 = vmatmul.mubr.f32.gmra.mrb[0].mxu0 %v415
    %v512 = vpop.f32.mrb[0].mxu0
    %v513 = vadd.f32 %v392, %v512
    %v514 = vpop.f32.mrb[0].mxu0
    %515 = vmatprep.mubr.f32.mxu0 0.0
    %516 = vmatmul.mubr.f32.gmra.mrb[0].mxu0 %v417
    %v517 = vpop.f32.mrb[0].mxu0
    %v518 = vadd.f32 %v397, %v517
    %v519 = vpop.f32.mrb[0].mxu0
    %520 = vmatprep.mubr.f32.mxu0 0.0
    %521 = vmatmul.mubr.f32.gmra.mrb[0].mxu0 %v419
    %v522 = vpop.f32.mrb[0].mxu0
    %v523 = vadd.f32 %v402, %v522
    %v524 = vpop.f32.mrb[0].mxu0
    %525 = vdwg.mxu0
    %v526 = vadd.f32 %v488, 0.0
    %v527 = vadd.f32 %v493, 0.0
    %v528 = vadd.f32 %v498, 0.0
    %v529 = vadd.f32 %v503, 0.0
    %v530 = vadd.f32 %v508, %v116
    %v531 = vadd.f32 %v513, %v121
    %v532 = vadd.f32 %v518, %v126
    %v533 = vadd.f32 %v523, %v131
    %s534 = scalar_lea.vmem %s1, 96
    %v535 = vld [vmem:[%s534] sm:$0xff]
    %v536 = vld [vmem:[%s534 + $0x8] sm:$0xff]
    %v537 = vld [vmem:[%s534 + $0x10] sm:$0xff]
    %v538 = vld [vmem:[%s534 + $0x18] sm:$0xff]
    %v539 = vld [vmem:[%s534 + $0x20] sm:$0xff]
    %v540 = vld [vmem:[%s534 + $0x28] sm:$0xff]
    %v541 = vld [vmem:[%s534 + $0x30] sm:$0xff]
    %v542 = vld [vmem:[%s534 + $0x38] sm:$0xff]
    %v543 = vld [vmem:[%s534 + $0x40] sm:$0xff]
    %v544 = vld [vmem:[%s534 + $0x48] sm:$0xff]
    %v545 = vld [vmem:[%s534 + $0x50] sm:$0xff]
    %v546 = vld [vmem:[%s534 + $0x58] sm:$0xff]
    %vm547 = vcmp.lt.s32.totalorder %v147, 2
    %548 = vrot.lane.b32.xlu0 %v530, 16
    %v549 = vpop.permute.xlu0 %548
    %v550 = vsel %vm161, %v549, %v530
    %551 = vrot.lane.b32.xlu0 %v531, 16
    %v552 = vpop.permute.xlu0 %551
    %v553 = vsel %vm161, %v552, %v531
    %554 = vrot.lane.b32.xlu0 %v532, 16
    %v555 = vpop.permute.xlu0 %554
    %v556 = vsel %vm161, %v555, %v532
    %557 = vrot.lane.b32.xlu0 %v533, 16
    %v558 = vpop.permute.xlu0 %557
    %v559 = vsel %vm161, %v558, %v533
    %560 = vrot.lane.b32.xlu0 %v550, 16
    %v561 = vpop.permute.xlu0 %560
    %562 = vrot.lane.b32.xlu0 %v553, 16
    %v563 = vpop.permute.xlu0 %562
    %564 = vrot.lane.b32.xlu0 %v556, 16
    %v565 = vpop.permute.xlu0 %564
    %566 = vrot.lane.b32.xlu0 %v559, 16
    %v567 = vpop.permute.xlu0 %566
    %v568 = vsel %vm161, %v561, %v530
    %v569 = vsel %vm161, %v563, %v531
    %v570 = vsel %vm161, %v565, %v532
    %v571 = vsel %vm161, %v567, %v533
    %576 = vrot.lane.b32.xlu0 %v568, 114
    %v577 = vpop.permute.xlu0 %576
    %578 = vrot.lane.b32.xlu0 %v569, 114
    %v579 = vpop.permute.xlu0 %578
    %580 = vrot.lane.b32.xlu0 %v570, 114
    %v581 = vpop.permute.xlu0 %580
    %582 = vrot.lane.b32.xlu0 %v571, 114
    %v583 = vpop.permute.xlu0 %582
    %v588 = vsel %vm547, 0.0, %v577
    %v589 = vsel %vm547, 0.0, %v579
    %v590 = vsel %vm547, 0.0, %v581
    %v591 = vsel %vm547, 0.0, %v583
    %593 = vset.pattern.permute.xlu0 32
    %594 = vperm.xlu0 %593, %v539
    %v595 = vpop.permute.xlu0 %594
    %598 = vset.pattern.permute.xlu0 32
    %599 = vperm.xlu0 %598, %v540
    %v600 = vpop.permute.xlu0 %599
    %603 = vset.pattern.permute.xlu0 32
    %604 = vperm.xlu0 %603, %v541
    %v605 = vpop.permute.xlu0 %604
    %608 = vset.pattern.permute.xlu0 32
    %609 = vperm.xlu0 %608, %v542
    %v610 = vpop.permute.xlu0 %609
    %v613 = vsel %vm226, %v535, 0
    %v616 = vsel %vm226, %v536, 0
    %v619 = vsel %vm226, %v537, 0
    %v622 = vsel %vm226, %v538, 0
    %624 = vmatprep.subr.mxu0 0.0
    %625 = vmatpush1.msra.mxu0 %v588
    %626 = vmatprep.subr.mxu0 0.0
    %627 = vmatpush1.msra.mxu0 %v589
    %628 = vmatprep.subr.mxu0 0.0
    %629 = vmatpush1.msra.mxu0 %v590
    %630 = vmatprep.subr.mxu0 0.0
    %631 = vmatpush1.msra.mxu0 %v591
    %632 = vmatprep.subr.mxu0 0.0
    %633 = vmatpush1.msra.mxu0 %v530
    %634 = vmatprep.subr.mxu0 0.0
    %635 = vmatpush1.msra.mxu0 %v531
    %636 = vmatprep.subr.mxu0 0.0
    %637 = vmatpush1.msra.mxu0 %v532
    %638 = vmatprep.subr.mxu0 0.0
    %639 = vmatpush1.msra.mxu0 %v533
    %640 = vmatprep.subr.mxu0 0.0
    %641 = vmatpush1.msra.mxu0 0.0
    %642 = vmatprep.subr.mxu0 0.0
    %643 = vmatpush1.msra.mxu0 0.0
    %644 = vmatprep.subr.mxu0 0.0
    %645 = vmatpush1.msra.mxu0 0.0
    %646 = vmatprep.subr.mxu0 0.0
    %647 = vmatpush1.msra.mxu0 0.0
    %648 = vmatprep.subr.mxu0 0.0
    %649 = vmatpush1.msra.mxu0 0.0
    %650 = vmatprep.subr.mxu0 0.0
    %651 = vmatpush1.msra.mxu0 0.0
    %652 = vmatprep.subr.mxu0 0.0
    %653 = vmatpush1.msra.mxu0 0.0
    %654 = vmatprep.subr.mxu0 0.0
    %655 = vmatpush1.msra.mxu0 0.0
    %656 = vmatprep.subr.mxu0 0.0
    %657 = vmatpush1.msra.mxu0 0.0
    %658 = vmatprep.subr.mxu0 0.0
    %659 = vmatpush1.msra.mxu0 0.0
    %660 = vmatprep.subr.mxu0 0.0
    %661 = vmatpush1.msra.mxu0 0.0
    %662 = vmatprep.subr.mxu0 0.0
    %663 = vmatpush1.msra.mxu0 0.0
    %664 = vmatprep.subr.mxu0 0.0
    %665 = vmatpush1.msra.mxu0 0.0
    %666 = vmatprep.subr.mxu0 0.0
    %667 = vmatpush1.msra.mxu0 0.0
    %668 = vmatprep.subr.mxu0 0.0
    %669 = vmatpush1.msra.mxu0 0.0
    %670 = vmatprep.subr.mxu0 0.0
    %671 = vmatpush1.msra.mxu0 0.0
    %672 = vmatprep.subr.mxu0 0.0
    %673 = vmatpush1.msra.mxu0 0.0
    %674 = vmatprep.subr.mxu0 0.0
    %675 = vmatpush1.msra.mxu0 0.0
    %676 = vmatprep.subr.mxu0 0.0
    %677 = vmatpush1.msra.mxu0 0.0
    %678 = vmatprep.subr.mxu0 0.0
    %679 = vmatpush1.msra.mxu0 0.0
    %680 = vmatprep.subr.mxu0 0.0
    %681 = vmatpush1.msra.mxu0 0.0
    %682 = vmatprep.subr.mxu0 0.0
    %683 = vmatpush1.msra.mxu0 0.0
    %684 = vmatprep.subr.mxu0 0.0
    %685 = vmatpush1.msra.mxu0 0.0
    %686 = vmatprep.subr.mxu0 0.0
    %687 = vmatpush1.msra.mxu0 0.0
    %688 = vmatprep.mubr.f32.mxu0 0.0
    %689 = vmatmul.mubr.f32.gmra.mrb[0].mxu0 %v613
    %v690 = vpop.f32.mrb[0].mxu0
    %v691 = vadd.f32 %v595, %v690
    %v692 = vpop.f32.mrb[0].mxu0
    %693 = vmatprep.mubr.f32.mxu0 0.0
    %694 = vmatmul.mubr.f32.gmra.mrb[0].mxu0 %v616
    %v695 = vpop.f32.mrb[0].mxu0
    %v696 = vadd.f32 %v600, %v695
    %v697 = vpop.f32.mrb[0].mxu0
    %698 = vmatprep.mubr.f32.mxu0 0.0
    %699 = vmatmul.mubr.f32.gmra.mrb[0].mxu0 %v619
    %v700 = vpop.f32.mrb[0].mxu0
    %v701 = vadd.f32 %v605, %v700
    %v702 = vpop.f32.mrb[0].mxu0
    %703 = vmatprep.mubr.f32.mxu0 0.0
    %704 = vmatmul.mubr.f32.gmra.mrb[0].mxu0 %v622
    %v705 = vpop.f32.mrb[0].mxu0
    %v706 = vadd.f32 %v610, %v705
    %v707 = vpop.f32.mrb[0].mxu0
    %708 = vdwg.mxu0
    %v709 = vmax.f32 %v691, -20.0
    %v710 = vmax.f32 %v696, -20.0
    %v711 = vmax.f32 %v701, -20.0
    %v712 = vmax.f32 %v706, -20.0
    %v713 = vsub.f32 0.0, %v709
    %v714 = vsub.f32 0.0, %v710
    %v715 = vsub.f32 0.0, %v711
    %v716 = vsub.f32 0.0, %v712
    %v717 = vmul.f32 %v713, 1.442695
    %v718 = vpow.pop %v717
    %v719 = vmul.f32 %v714, 1.442695
    %v720 = vpow.pop %v719
    %v721 = vmul.f32 %v715, 1.442695
    %v722 = vpow.pop %v721
    %v723 = vmul.f32 %v716, 1.442695
    %v724 = vpow.pop %v723
    %v725 = vmul.f32 %v718, %v718
    %v726 = vmul.f32 %v720, %v720
    %v727 = vmul.f32 %v722, %v722
    %v728 = vmul.f32 %v724, %v724
    %v729 = vsub.f32 1.0, %v725
    %v730 = vsub.f32 1.0, %v726
    %v731 = vsub.f32 1.0, %v727
    %v732 = vsub.f32 1.0, %v728
    %v733 = vadd.f32 %v725, 1.0
    %v734 = vadd.f32 %v726, 1.0
    %v735 = vadd.f32 %v727, 1.0
    %v736 = vadd.f32 %v728, 1.0
    %v737 = vadd.f32 %v718, 1.0
    %v738 = vadd.f32 %v720, 1.0
    %v739 = vadd.f32 %v722, 1.0
    %v740 = vadd.f32 %v724, 1.0
    %v741 = vmul.f32 %v733, %v737
    %v742 = vmul.f32 %v734, %v738
    %v743 = vmul.f32 %v735, %v739
    %v744 = vmul.f32 %v736, %v740
    %v745 = vrcp.pop %v741
    %v746 = vrcp.pop %v742
    %v747 = vrcp.pop %v743
    %v748 = vrcp.pop %v744
    %v749 = vmul.f32 %v729, %v745
    %v750 = vmul.f32 %v730, %v746
    %v751 = vmul.f32 %v731, %v747
    %v752 = vmul.f32 %v732, %v748
    %753 = vset.pattern.permute.xlu0 33
    %754 = vperm.xlu0 %753, %v539
    %v755 = vpop.permute.xlu0 %754
    %757 = vset.pattern.permute.xlu0 33
    %758 = vperm.xlu0 %757, %v540
    %v759 = vpop.permute.xlu0 %758
    %761 = vset.pattern.permute.xlu0 33
    %762 = vperm.xlu0 %761, %v541
    %v763 = vpop.permute.xlu0 %762
    %765 = vset.pattern.permute.xlu0 33
    %766 = vperm.xlu0 %765, %v542
    %v767 = vpop.permute.xlu0 %766
    %770 = vset.pattern.permute.xlu0 33
    %771 = vperm.xlu0 %770, %v543
    %v772 = vpop.permute.xlu0 %771
    %775 = vset.pattern.permute.xlu0 33
    %776 = vperm.xlu0 %775, %v544
    %v777 = vpop.permute.xlu0 %776
    %780 = vset.pattern.permute.xlu0 33
    %781 = vperm.xlu0 %780, %v545
    %v782 = vpop.permute.xlu0 %781
    %785 = vset.pattern.permute.xlu0 33
    %786 = vperm.xlu0 %785, %v546
    %v787 = vpop.permute.xlu0 %786
    %v789 = vsel %vm404, %v539, 0
    %v791 = vsel %vm404, %v540, 0
    %v793 = vsel %vm404, %v541, 0
    %v795 = vsel %vm404, %v542, 0
    %v797 = vsel %vm404, %v543, 0
    %v799 = vsel %vm404, %v544, 0
    %v801 = vsel %vm404, %v545, 0
    %v803 = vsel %vm404, %v546, 0
    %805 = vmatprep.subr.mxu0 0.0
    %806 = vmatpush1.msra.mxu0 %v749
    %807 = vmatprep.subr.mxu0 0.0
    %808 = vmatpush1.msra.mxu0 %v750
    %809 = vmatprep.subr.mxu0 0.0
    %810 = vmatpush1.msra.mxu0 %v751
    %811 = vmatprep.subr.mxu0 0.0
    %812 = vmatpush1.msra.mxu0 %v752
    %813 = vmatprep.subr.mxu0 0.0
    %814 = vmatpush1.msra.mxu0 0.0
    %815 = vmatprep.subr.mxu0 0.0
    %816 = vmatpush1.msra.mxu0 0.0
    %817 = vmatprep.subr.mxu0 0.0
    %818 = vmatpush1.msra.mxu0 0.0
    %819 = vmatprep.subr.mxu0 0.0
    %820 = vmatpush1.msra.mxu0 0.0
    %821 = vmatprep.subr.mxu0 0.0
    %822 = vmatpush1.msra.mxu0 0.0
    %823 = vmatprep.subr.mxu0 0.0
    %824 = vmatpush1.msra.mxu0 0.0
    %825 = vmatprep.subr.mxu0 0.0
    %826 = vmatpush1.msra.mxu0 0.0
    %827 = vmatprep.subr.mxu0 0.0
    %828 = vmatpush1.msra.mxu0 0.0
    %829 = vmatprep.subr.mxu0 0.0
    %830 = vmatpush1.msra.mxu0 0.0
    %831 = vmatprep.subr.mxu0 0.0
    %832 = vmatpush1.msra.mxu0 0.0
    %833 = vmatprep.subr.mxu0 0.0
    %834 = vmatpush1.msra.mxu0 0.0
    %835 = vmatprep.subr.mxu0 0.0
    %836 = vmatpush1.msra.mxu0 0.0
    %837 = vmatprep.subr.mxu0 0.0
    %838 = vmatpush1.msra.mxu0 0.0
    %839 = vmatprep.subr.mxu0 0.0
    %840 = vmatpush1.msra.mxu0 0.0
    %841 = vmatprep.subr.mxu0 0.0
    %842 = vmatpush1.msra.mxu0 0.0
    %843 = vmatprep.subr.mxu0 0.0
    %844 = vmatpush1.msra.mxu0 0.0
    %845 = vmatprep.subr.mxu0 0.0
    %846 = vmatpush1.msra.mxu0 0.0
    %847 = vmatprep.subr.mxu0 0.0
    %848 = vmatpush1.msra.mxu0 0.0
    %849 = vmatprep.subr.mxu0 0.0
    %850 = vmatpush1.msra.mxu0 0.0
    %851 = vmatprep.subr.mxu0 0.0
    %852 = vmatpush1.msra.mxu0 0.0
    %853 = vmatprep.subr.mxu0 0.0
    %854 = vmatpush1.msra.mxu0 0.0
    %855 = vmatprep.subr.mxu0 0.0
    %856 = vmatpush1.msra.mxu0 0.0
    %857 = vmatprep.subr.mxu0 0.0
    %858 = vmatpush1.msra.mxu0 0.0
    %859 = vmatprep.subr.mxu0 0.0
    %860 = vmatpush1.msra.mxu0 0.0
    %861 = vmatprep.subr.mxu0 0.0
    %862 = vmatpush1.msra.mxu0 0.0
    %863 = vmatprep.subr.mxu0 0.0
    %864 = vmatpush1.msra.mxu0 0.0
    %865 = vmatprep.subr.mxu0 0.0
    %866 = vmatpush1.msra.mxu0 0.0
    %867 = vmatprep.subr.mxu0 0.0
    %868 = vmatpush1.msra.mxu0 0.0
    %869 = vmatprep.mubr.f32.mxu0 0.0
    %870 = vmatmul.mubr.f32.gmra.mrb[0].mxu0 %v789
    %v871 = vpop.f32.mrb[0].mxu0
    %v872 = vadd.f32 %v755, %v871
    %v873 = vpop.f32.mrb[0].mxu0
    %874 = vmatprep.mubr.f32.mxu0 0.0
    %875 = vmatmul.mubr.f32.gmra.mrb[0].mxu0 %v791
    %v876 = vpop.f32.mrb[0].mxu0
    %v877 = vadd.f32 %v759, %v876
    %v878 = vpop.f32.mrb[0].mxu0
    %879 = vmatprep.mubr.f32.mxu0 0.0
    %880 = vmatmul.mubr.f32.gmra.mrb[0].mxu0 %v793
    %v881 = vpop.f32.mrb[0].mxu0
    %v882 = vadd.f32 %v763, %v881
    %v883 = vpop.f32.mrb[0].mxu0
    %884 = vmatprep.mubr.f32.mxu0 0.0
    %885 = vmatmul.mubr.f32.gmra.mrb[0].mxu0 %v795
    %v886 = vpop.f32.mrb[0].mxu0
    %v887 = vadd.f32 %v767, %v886
    %v888 = vpop.f32.mrb[0].mxu0
    %889 = vmatprep.mubr.f32.mxu0 0.0
    %890 = vmatmul.mubr.f32.gmra.mrb[0].mxu0 %v797
    %v891 = vpop.f32.mrb[0].mxu0
    %v892 = vadd.f32 %v772, %v891
    %v893 = vpop.f32.mrb[0].mxu0
    %894 = vmatprep.mubr.f32.mxu0 0.0
    %895 = vmatmul.mubr.f32.gmra.mrb[0].mxu0 %v799
    %v896 = vpop.f32.mrb[0].mxu0
    %v897 = vadd.f32 %v777, %v896
    %v898 = vpop.f32.mrb[0].mxu0
    %899 = vmatprep.mubr.f32.mxu0 0.0
    %900 = vmatmul.mubr.f32.gmra.mrb[0].mxu0 %v801
    %v901 = vpop.f32.mrb[0].mxu0
    %v902 = vadd.f32 %v782, %v901
    %v903 = vpop.f32.mrb[0].mxu0
    %904 = vmatprep.mubr.f32.mxu0 0.0
    %905 = vmatmul.mubr.f32.gmra.mrb[0].mxu0 %v803
    %v906 = vpop.f32.mrb[0].mxu0
    %v907 = vadd.f32 %v787, %v906
    %v908 = vpop.f32.mrb[0].mxu0
    %909 = vdwg.mxu0
    %v910 = vadd.f32 %v526, %v872
    %v911 = vadd.f32 %v527, %v877
    %v912 = vadd.f32 %v528, %v882
    %v913 = vadd.f32 %v529, %v887
    %v914 = vadd.f32 %v892, %v530
    %v915 = vadd.f32 %v897, %v531
    %v916 = vadd.f32 %v902, %v532
    %v917 = vadd.f32 %v907, %v533
    %s918 = scalar_lea.vmem %s1, 192
    %v919 = vld [vmem:[%s918] sm:$0xff]
    %v920 = vld [vmem:[%s918 + $0x8] sm:$0xff]
    %v921 = vld [vmem:[%s918 + $0x10] sm:$0xff]
    %v922 = vld [vmem:[%s918 + $0x18] sm:$0xff]
    %v923 = vld [vmem:[%s918 + $0x20] sm:$0xff]
    %v924 = vld [vmem:[%s918 + $0x28] sm:$0xff]
    %v925 = vld [vmem:[%s918 + $0x30] sm:$0xff]
    %v926 = vld [vmem:[%s918 + $0x38] sm:$0xff]
    %v927 = vld [vmem:[%s918 + $0x40] sm:$0xff]
    %v928 = vld [vmem:[%s918 + $0x48] sm:$0xff]
    %v929 = vld [vmem:[%s918 + $0x50] sm:$0xff]
    %v930 = vld [vmem:[%s918 + $0x58] sm:$0xff]
    %vm931 = vcmp.lt.s32.totalorder %v147, 4
    %932 = vrot.lane.b32.xlu0 %v914, 16
    %v933 = vpop.permute.xlu0 %932
    %v934 = vsel %vm161, %v933, %v914
    %935 = vrot.lane.b32.xlu0 %v915, 16
    %v936 = vpop.permute.xlu0 %935
    %v937 = vsel %vm161, %v936, %v915
    %938 = vrot.lane.b32.xlu0 %v916, 16
    %v939 = vpop.permute.xlu0 %938
    %v940 = vsel %vm161, %v939, %v916
    %941 = vrot.lane.b32.xlu0 %v917, 16
    %v942 = vpop.permute.xlu0 %941
    %v943 = vsel %vm161, %v942, %v917
    %944 = vrot.lane.b32.xlu0 %v934, 16
    %v945 = vpop.permute.xlu0 %944
    %946 = vrot.lane.b32.xlu0 %v937, 16
    %v947 = vpop.permute.xlu0 %946
    %948 = vrot.lane.b32.xlu0 %v940, 16
    %v949 = vpop.permute.xlu0 %948
    %950 = vrot.lane.b32.xlu0 %v943, 16
    %v951 = vpop.permute.xlu0 %950
    %v952 = vsel %vm161, %v945, %v914
    %v953 = vsel %vm161, %v947, %v915
    %v954 = vsel %vm161, %v949, %v916
    %v955 = vsel %vm161, %v951, %v917
    %960 = vrot.lane.b32.xlu0 %v952, 116
    %v961 = vpop.permute.xlu0 %960
    %962 = vrot.lane.b32.xlu0 %v953, 116
    %v963 = vpop.permute.xlu0 %962
    %964 = vrot.lane.b32.xlu0 %v954, 116
    %v965 = vpop.permute.xlu0 %964
    %966 = vrot.lane.b32.xlu0 %v955, 116
    %v967 = vpop.permute.xlu0 %966
    %v972 = vsel %vm931, 0.0, %v961
    %v973 = vsel %vm931, 0.0, %v963
    %v974 = vsel %vm931, 0.0, %v965
    %v975 = vsel %vm931, 0.0, %v967
    %977 = vset.pattern.permute.xlu0 32
    %978 = vperm.xlu0 %977, %v923
    %v979 = vpop.permute.xlu0 %978
    %982 = vset.pattern.permute.xlu0 32
    %983 = vperm.xlu0 %982, %v924
    %v984 = vpop.permute.xlu0 %983
    %987 = vset.pattern.permute.xlu0 32
    %988 = vperm.xlu0 %987, %v925
    %v989 = vpop.permute.xlu0 %988
    %992 = vset.pattern.permute.xlu0 32
    %993 = vperm.xlu0 %992, %v926
    %v994 = vpop.permute.xlu0 %993
    %v997 = vsel %vm226, %v919, 0
    %v1000 = vsel %vm226, %v920, 0
    %v1003 = vsel %vm226, %v921, 0
    %v1006 = vsel %vm226, %v922, 0
    %1008 = vmatprep.subr.mxu0 0.0
    %1009 = vmatpush1.msra.mxu0 %v972
    %1010 = vmatprep.subr.mxu0 0.0
    %1011 = vmatpush1.msra.mxu0 %v973
    %1012 = vmatprep.subr.mxu0 0.0
    %1013 = vmatpush1.msra.mxu0 %v974
    %1014 = vmatprep.subr.mxu0 0.0
    %1015 = vmatpush1.msra.mxu0 %v975
    %1016 = vmatprep.subr.mxu0 0.0
    %1017 = vmatpush1.msra.mxu0 %v914
    %1018 = vmatprep.subr.mxu0 0.0
    %1019 = vmatpush1.msra.mxu0 %v915
    %1020 = vmatprep.subr.mxu0 0.0
    %1021 = vmatpush1.msra.mxu0 %v916
    %1022 = vmatprep.subr.mxu0 0.0
    %1023 = vmatpush1.msra.mxu0 %v917
    %1024 = vmatprep.subr.mxu0 0.0
    %1025 = vmatpush1.msra.mxu0 0.0
    %1026 = vmatprep.subr.mxu0 0.0
    %1027 = vmatpush1.msra.mxu0 0.0
    %1028 = vmatprep.subr.mxu0 0.0
    %1029 = vmatpush1.msra.mxu0 0.0
    %1030 = vmatprep.subr.mxu0 0.0
    %1031 = vmatpush1.msra.mxu0 0.0
    %1032 = vmatprep.subr.mxu0 0.0
    %1033 = vmatpush1.msra.mxu0 0.0
    %1034 = vmatprep.subr.mxu0 0.0
    %1035 = vmatpush1.msra.mxu0 0.0
    %1036 = vmatprep.subr.mxu0 0.0
    %1037 = vmatpush1.msra.mxu0 0.0
    %1038 = vmatprep.subr.mxu0 0.0
    %1039 = vmatpush1.msra.mxu0 0.0
    %1040 = vmatprep.subr.mxu0 0.0
    %1041 = vmatpush1.msra.mxu0 0.0
    %1042 = vmatprep.subr.mxu0 0.0
    %1043 = vmatpush1.msra.mxu0 0.0
    %1044 = vmatprep.subr.mxu0 0.0
    %1045 = vmatpush1.msra.mxu0 0.0
    %1046 = vmatprep.subr.mxu0 0.0
    %1047 = vmatpush1.msra.mxu0 0.0
    %1048 = vmatprep.subr.mxu0 0.0
    %1049 = vmatpush1.msra.mxu0 0.0
    %1050 = vmatprep.subr.mxu0 0.0
    %1051 = vmatpush1.msra.mxu0 0.0
    %1052 = vmatprep.subr.mxu0 0.0
    %1053 = vmatpush1.msra.mxu0 0.0
    %1054 = vmatprep.subr.mxu0 0.0
    %1055 = vmatpush1.msra.mxu0 0.0
    %1056 = vmatprep.subr.mxu0 0.0
    %1057 = vmatpush1.msra.mxu0 0.0
    %1058 = vmatprep.subr.mxu0 0.0
    %1059 = vmatpush1.msra.mxu0 0.0
    %1060 = vmatprep.subr.mxu0 0.0
    %1061 = vmatpush1.msra.mxu0 0.0
    %1062 = vmatprep.subr.mxu0 0.0
    %1063 = vmatpush1.msra.mxu0 0.0
    %1064 = vmatprep.subr.mxu0 0.0
    %1065 = vmatpush1.msra.mxu0 0.0
    %1066 = vmatprep.subr.mxu0 0.0
    %1067 = vmatpush1.msra.mxu0 0.0
    %1068 = vmatprep.subr.mxu0 0.0
    %1069 = vmatpush1.msra.mxu0 0.0
    %1070 = vmatprep.subr.mxu0 0.0
    %1071 = vmatpush1.msra.mxu0 0.0
    %1072 = vmatprep.mubr.f32.mxu0 0.0
    %1073 = vmatmul.mubr.f32.gmra.mrb[0].mxu0 %v997
    %v1074 = vpop.f32.mrb[0].mxu0
    %v1075 = vadd.f32 %v979, %v1074
    %v1076 = vpop.f32.mrb[0].mxu0
    %1077 = vmatprep.mubr.f32.mxu0 0.0
    %1078 = vmatmul.mubr.f32.gmra.mrb[0].mxu0 %v1000
    %v1079 = vpop.f32.mrb[0].mxu0
    %v1080 = vadd.f32 %v984, %v1079
    %v1081 = vpop.f32.mrb[0].mxu0
    %1082 = vmatprep.mubr.f32.mxu0 0.0
    %1083 = vmatmul.mubr.f32.gmra.mrb[0].mxu0 %v1003
    %v1084 = vpop.f32.mrb[0].mxu0
    %v1085 = vadd.f32 %v989, %v1084
    %v1086 = vpop.f32.mrb[0].mxu0
    %1087 = vmatprep.mubr.f32.mxu0 0.0
    %1088 = vmatmul.mubr.f32.gmra.mrb[0].mxu0 %v1006
    %v1089 = vpop.f32.mrb[0].mxu0
    %v1090 = vadd.f32 %v994, %v1089
    %v1091 = vpop.f32.mrb[0].mxu0
    %1092 = vdwg.mxu0
    %v1093 = vmax.f32 %v1075, -20.0
    %v1094 = vmax.f32 %v1080, -20.0
    %v1095 = vmax.f32 %v1085, -20.0
    %v1096 = vmax.f32 %v1090, -20.0
    %v1097 = vsub.f32 0.0, %v1093
    %v1098 = vsub.f32 0.0, %v1094
    %v1099 = vsub.f32 0.0, %v1095
    %v1100 = vsub.f32 0.0, %v1096
    %v1101 = vmul.f32 %v1097, 1.442695
    %v1102 = vpow.pop %v1101
    %v1103 = vmul.f32 %v1098, 1.442695
    %v1104 = vpow.pop %v1103
    %v1105 = vmul.f32 %v1099, 1.442695
    %v1106 = vpow.pop %v1105
    %v1107 = vmul.f32 %v1100, 1.442695
    %v1108 = vpow.pop %v1107
    %v1109 = vmul.f32 %v1102, %v1102
    %v1110 = vmul.f32 %v1104, %v1104
    %v1111 = vmul.f32 %v1106, %v1106
    %v1112 = vmul.f32 %v1108, %v1108
    %v1113 = vsub.f32 1.0, %v1109
    %v1114 = vsub.f32 1.0, %v1110
    %v1115 = vsub.f32 1.0, %v1111
    %v1116 = vsub.f32 1.0, %v1112
    %v1117 = vadd.f32 %v1109, 1.0
    %v1118 = vadd.f32 %v1110, 1.0
    %v1119 = vadd.f32 %v1111, 1.0
    %v1120 = vadd.f32 %v1112, 1.0
    %v1121 = vadd.f32 %v1102, 1.0
    %v1122 = vadd.f32 %v1104, 1.0
    %v1123 = vadd.f32 %v1106, 1.0
    %v1124 = vadd.f32 %v1108, 1.0
    %v1125 = vmul.f32 %v1117, %v1121
    %v1126 = vmul.f32 %v1118, %v1122
    %v1127 = vmul.f32 %v1119, %v1123
    %v1128 = vmul.f32 %v1120, %v1124
    %v1129 = vrcp.pop %v1125
    %v1130 = vrcp.pop %v1126
    %v1131 = vrcp.pop %v1127
    %v1132 = vrcp.pop %v1128
    %v1133 = vmul.f32 %v1113, %v1129
    %v1134 = vmul.f32 %v1114, %v1130
    %v1135 = vmul.f32 %v1115, %v1131
    %v1136 = vmul.f32 %v1116, %v1132
    %1137 = vset.pattern.permute.xlu0 33
    %1138 = vperm.xlu0 %1137, %v923
    %v1139 = vpop.permute.xlu0 %1138
    %1141 = vset.pattern.permute.xlu0 33
    %1142 = vperm.xlu0 %1141, %v924
    %v1143 = vpop.permute.xlu0 %1142
    %1145 = vset.pattern.permute.xlu0 33
    %1146 = vperm.xlu0 %1145, %v925
    %v1147 = vpop.permute.xlu0 %1146
    %1149 = vset.pattern.permute.xlu0 33
    %1150 = vperm.xlu0 %1149, %v926
    %v1151 = vpop.permute.xlu0 %1150
    %1154 = vset.pattern.permute.xlu0 33
    %1155 = vperm.xlu0 %1154, %v927
    %v1156 = vpop.permute.xlu0 %1155
    %1158 = vset.pattern.permute.xlu0 33
    %1159 = vperm.xlu0 %1158, %v928
    %v1160 = vpop.permute.xlu0 %1159
    %1162 = vset.pattern.permute.xlu0 33
    %1163 = vperm.xlu0 %1162, %v929
    %v1164 = vpop.permute.xlu0 %1163
    %1166 = vset.pattern.permute.xlu0 33
    %1167 = vperm.xlu0 %1166, %v930
    %v1168 = vpop.permute.xlu0 %1167
    %v1169 = vsel %vm404, %v923, 0
    %v1171 = vsel %vm404, %v924, 0
    %v1173 = vsel %vm404, %v925, 0
    %v1175 = vsel %vm404, %v926, 0
    %v1177 = vsel %vm404, %v927, 0
    %v1179 = vsel %vm404, %v928, 0
    %v1181 = vsel %vm404, %v929, 0
    %v1183 = vsel %vm404, %v930, 0
    %1185 = vmatprep.subr.mxu0 0.0
    %1186 = vmatpush1.msra.mxu0 %v1133
    %1187 = vmatprep.subr.mxu0 0.0
    %1188 = vmatpush1.msra.mxu0 %v1134
    %1189 = vmatprep.subr.mxu0 0.0
    %1190 = vmatpush1.msra.mxu0 %v1135
    %1191 = vmatprep.subr.mxu0 0.0
    %1192 = vmatpush1.msra.mxu0 %v1136
    %1193 = vmatprep.subr.mxu0 0.0
    %1194 = vmatpush1.msra.mxu0 0.0
    %1195 = vmatprep.subr.mxu0 0.0
    %1196 = vmatpush1.msra.mxu0 0.0
    %1197 = vmatprep.subr.mxu0 0.0
    %1198 = vmatpush1.msra.mxu0 0.0
    %1199 = vmatprep.subr.mxu0 0.0
    %1200 = vmatpush1.msra.mxu0 0.0
    %1201 = vmatprep.subr.mxu0 0.0
    %1202 = vmatpush1.msra.mxu0 0.0
    %1203 = vmatprep.subr.mxu0 0.0
    %1204 = vmatpush1.msra.mxu0 0.0
    %1205 = vmatprep.subr.mxu0 0.0
    %1206 = vmatpush1.msra.mxu0 0.0
    %1207 = vmatprep.subr.mxu0 0.0
    %1208 = vmatpush1.msra.mxu0 0.0
    %1209 = vmatprep.subr.mxu0 0.0
    %1210 = vmatpush1.msra.mxu0 0.0
    %1211 = vmatprep.subr.mxu0 0.0
    %1212 = vmatpush1.msra.mxu0 0.0
    %1213 = vmatprep.subr.mxu0 0.0
    %1214 = vmatpush1.msra.mxu0 0.0
    %1215 = vmatprep.subr.mxu0 0.0
    %1216 = vmatpush1.msra.mxu0 0.0
    %1217 = vmatprep.subr.mxu0 0.0
    %1218 = vmatpush1.msra.mxu0 0.0
    %1219 = vmatprep.subr.mxu0 0.0
    %1220 = vmatpush1.msra.mxu0 0.0
    %1221 = vmatprep.subr.mxu0 0.0
    %1222 = vmatpush1.msra.mxu0 0.0
    %1223 = vmatprep.subr.mxu0 0.0
    %1224 = vmatpush1.msra.mxu0 0.0
    %1225 = vmatprep.subr.mxu0 0.0
    %1226 = vmatpush1.msra.mxu0 0.0
    %1227 = vmatprep.subr.mxu0 0.0
    %1228 = vmatpush1.msra.mxu0 0.0
    %1229 = vmatprep.subr.mxu0 0.0
    %1230 = vmatpush1.msra.mxu0 0.0
    %1231 = vmatprep.subr.mxu0 0.0
    %1232 = vmatpush1.msra.mxu0 0.0
    %1233 = vmatprep.subr.mxu0 0.0
    %1234 = vmatpush1.msra.mxu0 0.0
    %1235 = vmatprep.subr.mxu0 0.0
    %1236 = vmatpush1.msra.mxu0 0.0
    %1237 = vmatprep.subr.mxu0 0.0
    %1238 = vmatpush1.msra.mxu0 0.0
    %1239 = vmatprep.subr.mxu0 0.0
    %1240 = vmatpush1.msra.mxu0 0.0
    %1241 = vmatprep.subr.mxu0 0.0
    %1242 = vmatpush1.msra.mxu0 0.0
    %1243 = vmatprep.subr.mxu0 0.0
    %1244 = vmatpush1.msra.mxu0 0.0
    %1245 = vmatprep.subr.mxu0 0.0
    %1246 = vmatpush1.msra.mxu0 0.0
    %1247 = vmatprep.subr.mxu0 0.0
    %1248 = vmatpush1.msra.mxu0 0.0
    %1249 = vmatprep.mubr.f32.mxu0 0.0
    %1250 = vmatmul.mubr.f32.gmra.mrb[0].mxu0 %v1169
    %v1251 = vpop.f32.mrb[0].mxu0
    %v1252 = vadd.f32 %v1139, %v1251
    %v1253 = vpop.f32.mrb[0].mxu0
    %1254 = vmatprep.mubr.f32.mxu0 0.0
    %1255 = vmatmul.mubr.f32.gmra.mrb[0].mxu0 %v1171
    %v1256 = vpop.f32.mrb[0].mxu0
    %v1257 = vadd.f32 %v1143, %v1256
    %v1258 = vpop.f32.mrb[0].mxu0
    %1259 = vmatprep.mubr.f32.mxu0 0.0
    %1260 = vmatmul.mubr.f32.gmra.mrb[0].mxu0 %v1173
    %v1261 = vpop.f32.mrb[0].mxu0
    %v1262 = vadd.f32 %v1147, %v1261
    %v1263 = vpop.f32.mrb[0].mxu0
    %1264 = vmatprep.mubr.f32.mxu0 0.0
    %1265 = vmatmul.mubr.f32.gmra.mrb[0].mxu0 %v1175
    %v1266 = vpop.f32.mrb[0].mxu0
    %v1267 = vadd.f32 %v1151, %v1266
    %v1268 = vpop.f32.mrb[0].mxu0
    %1269 = vmatprep.mubr.f32.mxu0 0.0
    %1270 = vmatmul.mubr.f32.gmra.mrb[0].mxu0 %v1177
    %v1271 = vpop.f32.mrb[0].mxu0
    %v1272 = vpop.f32.mrb[0].mxu0
    %1273 = vmatprep.mubr.f32.mxu0 0.0
    %1274 = vmatmul.mubr.f32.gmra.mrb[0].mxu0 %v1179
    %v1275 = vpop.f32.mrb[0].mxu0
    %v1276 = vpop.f32.mrb[0].mxu0
    %1277 = vmatprep.mubr.f32.mxu0 0.0
    %1278 = vmatmul.mubr.f32.gmra.mrb[0].mxu0 %v1181
    %v1279 = vpop.f32.mrb[0].mxu0
    %v1280 = vpop.f32.mrb[0].mxu0
    %1281 = vmatprep.mubr.f32.mxu0 0.0
    %1282 = vmatmul.mubr.f32.gmra.mrb[0].mxu0 %v1183
    %v1283 = vpop.f32.mrb[0].mxu0
    %v1284 = vpop.f32.mrb[0].mxu0
    %1285 = vdwg.mxu0
    %v1286 = vadd.f32 %v910, %v1252
    %v1287 = vadd.f32 %v911, %v1257
    %v1288 = vadd.f32 %v912, %v1262
    %v1289 = vadd.f32 %v913, %v1267
    %v1290 = vmax.f32 %v1286, 0.0
    %v1291 = vmax.f32 %v1287, 0.0
    %v1292 = vmax.f32 %v1288, 0.0
    %v1293 = vmax.f32 %v1289, 0.0
    %v1294 = vld [vmem:[%s2 + $0x20] sm:$0xff]
    %v1295 = vld [vmem:[%s2 + $0x28] sm:$0xff]
    %v1296 = vld [vmem:[%s2 + $0x30] sm:$0xff]
    %v1297 = vld [vmem:[%s2 + $0x38] sm:$0xff]
    %1299 = vset.pattern.permute.xlu0 32
    %1300 = vperm.xlu0 %1299, %v1294
    %v1301 = vpop.permute.xlu0 %1300
    %1304 = vset.pattern.permute.xlu0 32
    %1305 = vperm.xlu0 %1304, %v1295
    %v1306 = vpop.permute.xlu0 %1305
    %1309 = vset.pattern.permute.xlu0 32
    %1310 = vperm.xlu0 %1309, %v1296
    %v1311 = vpop.permute.xlu0 %1310
    %1314 = vset.pattern.permute.xlu0 32
    %1315 = vperm.xlu0 %1314, %v1297
    %v1316 = vpop.permute.xlu0 %1315
    %v1318 = vsel %vm404, %v1294, 0
    %v1320 = vsel %vm404, %v1295, 0
    %v1322 = vsel %vm404, %v1296, 0
    %v1324 = vsel %vm404, %v1297, 0
    %1326 = vmatprep.subr.mxu0 0.0
    %1327 = vmatpush1.msra.mxu0 %v1290
    %1328 = vmatprep.subr.mxu0 0.0
    %1329 = vmatpush1.msra.mxu0 %v1291
    %1330 = vmatprep.subr.mxu0 0.0
    %1331 = vmatpush1.msra.mxu0 %v1292
    %1332 = vmatprep.subr.mxu0 0.0
    %1333 = vmatpush1.msra.mxu0 %v1293
    %1334 = vmatprep.subr.mxu0 0.0
    %1335 = vmatpush1.msra.mxu0 0.0
    %1336 = vmatprep.subr.mxu0 0.0
    %1337 = vmatpush1.msra.mxu0 0.0
    %1338 = vmatprep.subr.mxu0 0.0
    %1339 = vmatpush1.msra.mxu0 0.0
    %1340 = vmatprep.subr.mxu0 0.0
    %1341 = vmatpush1.msra.mxu0 0.0
    %1342 = vmatprep.subr.mxu0 0.0
    %1343 = vmatpush1.msra.mxu0 0.0
    %1344 = vmatprep.subr.mxu0 0.0
    %1345 = vmatpush1.msra.mxu0 0.0
    %1346 = vmatprep.subr.mxu0 0.0
    %1347 = vmatpush1.msra.mxu0 0.0
    %1348 = vmatprep.subr.mxu0 0.0
    %1349 = vmatpush1.msra.mxu0 0.0
    %1350 = vmatprep.subr.mxu0 0.0
    %1351 = vmatpush1.msra.mxu0 0.0
    %1352 = vmatprep.subr.mxu0 0.0
    %1353 = vmatpush1.msra.mxu0 0.0
    %1354 = vmatprep.subr.mxu0 0.0
    %1355 = vmatpush1.msra.mxu0 0.0
    %1356 = vmatprep.subr.mxu0 0.0
    %1357 = vmatpush1.msra.mxu0 0.0
    %1358 = vmatprep.subr.mxu0 0.0
    %1359 = vmatpush1.msra.mxu0 0.0
    %1360 = vmatprep.subr.mxu0 0.0
    %1361 = vmatpush1.msra.mxu0 0.0
    %1362 = vmatprep.subr.mxu0 0.0
    %1363 = vmatpush1.msra.mxu0 0.0
    %1364 = vmatprep.subr.mxu0 0.0
    %1365 = vmatpush1.msra.mxu0 0.0
    %1366 = vmatprep.subr.mxu0 0.0
    %1367 = vmatpush1.msra.mxu0 0.0
    %1368 = vmatprep.subr.mxu0 0.0
    %1369 = vmatpush1.msra.mxu0 0.0
    %1370 = vmatprep.subr.mxu0 0.0
    %1371 = vmatpush1.msra.mxu0 0.0
    %1372 = vmatprep.subr.mxu0 0.0
    %1373 = vmatpush1.msra.mxu0 0.0
    %1374 = vmatprep.subr.mxu0 0.0
    %1375 = vmatpush1.msra.mxu0 0.0
    %1376 = vmatprep.subr.mxu0 0.0
    %1377 = vmatpush1.msra.mxu0 0.0
    %1378 = vmatprep.subr.mxu0 0.0
    %1379 = vmatpush1.msra.mxu0 0.0
    %1380 = vmatprep.subr.mxu0 0.0
    %1381 = vmatpush1.msra.mxu0 0.0
    %1382 = vmatprep.subr.mxu0 0.0
    %1383 = vmatpush1.msra.mxu0 0.0
    %1384 = vmatprep.subr.mxu0 0.0
    %1385 = vmatpush1.msra.mxu0 0.0
    %1386 = vmatprep.subr.mxu0 0.0
    %1387 = vmatpush1.msra.mxu0 0.0
    %1388 = vmatprep.subr.mxu0 0.0
    %1389 = vmatpush1.msra.mxu0 0.0
    %1390 = vmatprep.mubr.f32.mxu0 0.0
    %1391 = vmatmul.mubr.f32.gmra.mrb[0].mxu0 %v1318
    %v1392 = vpop.f32.mrb[0].mxu0
    %v1393 = vadd.f32 %v1301, %v1392
    %v1394 = vpop.f32.mrb[0].mxu0
    %1395 = vmatprep.mubr.f32.mxu0 0.0
    %1396 = vmatmul.mubr.f32.gmra.mrb[0].mxu0 %v1320
    %v1397 = vpop.f32.mrb[0].mxu0
    %v1398 = vadd.f32 %v1306, %v1397
    %v1399 = vpop.f32.mrb[0].mxu0
    %1400 = vmatprep.mubr.f32.mxu0 0.0
    %1401 = vmatmul.mubr.f32.gmra.mrb[0].mxu0 %v1322
    %v1402 = vpop.f32.mrb[0].mxu0
    %v1403 = vadd.f32 %v1311, %v1402
    %v1404 = vpop.f32.mrb[0].mxu0
    %1405 = vmatprep.mubr.f32.mxu0 0.0
    %1406 = vmatmul.mubr.f32.gmra.mrb[0].mxu0 %v1324
    %v1407 = vpop.f32.mrb[0].mxu0
    %v1408 = vadd.f32 %v1316, %v1407
    %v1409 = vpop.f32.mrb[0].mxu0
    %1410 = vdwg.mxu0
    %v1411 = vmax.f32 %v1393, 0.0
    %v1412 = vmax.f32 %v1398, 0.0
    %v1413 = vmax.f32 %v1403, 0.0
    %v1414 = vmax.f32 %v1408, 0.0
    %v1415 = vld [vmem:[%s2 + $0x40] sm:$0xf]
    %1417 = vset.pattern.permute.xlu0 32
    %1418 = vperm.xlu0 %1417, %v1415
    %v1419 = vpop.permute.xlu0 %1418
    %v1421 = vsel %vm404, %v1415, 0
    %1423 = vmatprep.subr.mxu0 0.0
    %1424 = vmatpush1.msra.mxu0 %v1411
    %1425 = vmatprep.subr.mxu0 0.0
    %1426 = vmatpush1.msra.mxu0 %v1412
    %1427 = vmatprep.subr.mxu0 0.0
    %1428 = vmatpush1.msra.mxu0 %v1413
    %1429 = vmatprep.subr.mxu0 0.0
    %1430 = vmatpush1.msra.mxu0 %v1414
    %1431 = vmatprep.subr.mxu0 0.0
    %1432 = vmatpush1.msra.mxu0 0.0
    %1433 = vmatprep.subr.mxu0 0.0
    %1434 = vmatpush1.msra.mxu0 0.0
    %1435 = vmatprep.subr.mxu0 0.0
    %1436 = vmatpush1.msra.mxu0 0.0
    %1437 = vmatprep.subr.mxu0 0.0
    %1438 = vmatpush1.msra.mxu0 0.0
    %1439 = vmatprep.subr.mxu0 0.0
    %1440 = vmatpush1.msra.mxu0 0.0
    %1441 = vmatprep.subr.mxu0 0.0
    %1442 = vmatpush1.msra.mxu0 0.0
    %1443 = vmatprep.subr.mxu0 0.0
    %1444 = vmatpush1.msra.mxu0 0.0
    %1445 = vmatprep.subr.mxu0 0.0
    %1446 = vmatpush1.msra.mxu0 0.0
    %1447 = vmatprep.subr.mxu0 0.0
    %1448 = vmatpush1.msra.mxu0 0.0
    %1449 = vmatprep.subr.mxu0 0.0
    %1450 = vmatpush1.msra.mxu0 0.0
    %1451 = vmatprep.subr.mxu0 0.0
    %1452 = vmatpush1.msra.mxu0 0.0
    %1453 = vmatprep.subr.mxu0 0.0
    %1454 = vmatpush1.msra.mxu0 0.0
    %1455 = vmatprep.subr.mxu0 0.0
    %1456 = vmatpush1.msra.mxu0 0.0
    %1457 = vmatprep.subr.mxu0 0.0
    %1458 = vmatpush1.msra.mxu0 0.0
    %1459 = vmatprep.subr.mxu0 0.0
    %1460 = vmatpush1.msra.mxu0 0.0
    %1461 = vmatprep.subr.mxu0 0.0
    %1462 = vmatpush1.msra.mxu0 0.0
    %1463 = vmatprep.subr.mxu0 0.0
    %1464 = vmatpush1.msra.mxu0 0.0
    %1465 = vmatprep.subr.mxu0 0.0
    %1466 = vmatpush1.msra.mxu0 0.0
    %1467 = vmatprep.subr.mxu0 0.0
    %1468 = vmatpush1.msra.mxu0 0.0
    %1469 = vmatprep.subr.mxu0 0.0
    %1470 = vmatpush1.msra.mxu0 0.0
    %1471 = vmatprep.subr.mxu0 0.0
    %1472 = vmatpush1.msra.mxu0 0.0
    %1473 = vmatprep.subr.mxu0 0.0
    %1474 = vmatpush1.msra.mxu0 0.0
    %1475 = vmatprep.subr.mxu0 0.0
    %1476 = vmatpush1.msra.mxu0 0.0
    %1477 = vmatprep.subr.mxu0 0.0
    %1478 = vmatpush1.msra.mxu0 0.0
    %1479 = vmatprep.subr.mxu0 0.0
    %1480 = vmatpush1.msra.mxu0 0.0
    %1481 = vmatprep.subr.mxu0 0.0
    %1482 = vmatpush1.msra.mxu0 0.0
    %1483 = vmatprep.subr.mxu0 0.0
    %1484 = vmatpush1.msra.mxu0 0.0
    %1485 = vmatprep.subr.mxu0 0.0
    %1486 = vmatpush1.msra.mxu0 0.0
    %1487 = vmatprep.mubr.f32.mxu0 0.0
    %1488 = vmatmul.mubr.f32.gmra.mrb[0].mxu0 %v1421
    %v1489 = vpop.f32.mrb[0].mxu0
    %v1490 = vadd.f32 %v1419, %v1489
    %v1491 = vpop.f32.mrb[0].mxu0
    %1492 = vdwg.mxu0
    %vm1493 = vcmask 125952
    %1494 = vst.msk [vmem:[#allocation2] sm:$0xf] %vm1493, %v1490
    // Predicated region
    $region14: #{tpu_custom_call.1} parent=1 // pred_check
      _
    $region15: #{tpu_custom_call.1} parent=1 // pred_check_branch
      %1496 = sbr.rel (0) target = $region17
    $region16: #{tpu_custom_call.1} parent=1 // pred_region
      %s1498 = ssub.s32 64, 64
      %1499 = vsyncadd [#allocation3], %s1498
      %s1501 = sshll.u32 [#allocation2], 4
      %s1502 = int_to_ptr.vmem [resolvable:$true] %s1501
      %1504 = dma.vmem_to_hbm [thread:$0]  %s1502, 64, %s3, [#allocation3]
    $region17: #{tpu_custom_call.1} parent=1 // pred_fallthru
      _
    // Predicated region
    $region18: #{tpu_custom_call.1} parent=1 // pred_check
      _
    $region19: #{tpu_custom_call.1} parent=1 // pred_check_branch
      %1506 = sbr.rel (0) target = $region21
    $region20: #{tpu_custom_call.1} parent=1 // pred_region
      %1507 = dma.done [#allocation3], 64
    $region21: #{tpu_custom_call.1} parent=1 // pred_fallthru
      _
    %1508 = vsyncpa [#allocation3], 1

</llo_original>
